<compile_context>
chip_gen: v7x
topology: tpu7x:2x2x1
jax: 0.10.0
libtpu: 0.0.40
codegen_flags: <defaults>
</compile_context>

<pallas_src>
import functools

import jax
import jax.numpy as jnp
from jax import lax
from jax.experimental import pallas as pl
from jax.experimental.pallas import tpu as pltpu


def _conv_stats_kernel(w_ref, e0_ref, e1_ref, e2_ref, o0_ref, o1_ref, o2_ref,
                       y_ref, s1_ref, s2_ref, *, wo, howo):
    """Per-image 3x3/stride-2 conv as 9 (Cout,Cin)@(Cin,Ho*Wo) MXU matmuls,
    plus per-image partial BatchNorm statistics (sum, sum of squares)."""
    even_planes = (e0_ref, e1_ref, e2_ref)   # even padded rows, cols kw::2
    odd_planes = (o0_ref, o1_ref, o2_ref)    # odd  padded rows, cols kw::2

    acc = None
    for kw in range(3):
        e = even_planes[kw][0]               # (Cin, (Ho+1)*Wo)
        o = odd_planes[kw][0]                # (Cin, Ho*Wo)
        taps = (
            (0, e[:, 0:howo]),               # kh = 0 : even rows, row offset 0
            (1, o),                          # kh = 1 : odd rows
            (2, e[:, wo:wo + howo]),         # kh = 2 : even rows, row offset +1
        )
        for kh, x_tap in taps:
            w_tap = w_ref[kh * 3 + kw]       # (Cout, Cin)
            t = jnp.dot(w_tap, x_tap, preferred_element_type=jnp.float32)
            acc = t if acc is None else acc + t

    y_ref[0] = acc                                            # (Cout, Ho*Wo)
    s1_ref[0] = jnp.sum(acc, axis=1, keepdims=True)           # (Cout, 1)
    s2_ref[0] = jnp.sum(acc * acc, axis=1, keepdims=True)     # (Cout, 1)


def _bn_lrelu_kernel(y_ref, scale_ref, shift_ref, o_ref, *, alpha):
    """Fused affine BatchNorm (pre-folded per-channel scale/shift) + LeakyReLU."""
    z = y_ref[0] * scale_ref[...] + shift_ref[...]
    o_ref[0] = jnp.where(z >= 0, z, alpha * z)


@functools.partial(jax.jit, static_argnames=("alpha", "eps"))
def conv_bn_lrelu(x_nchw, w_oihw, conv_b, gamma, beta, alpha, eps=1e-5):
    # conv_b cancels exactly under training-mode BatchNorm (batch-mean subtract),
    # so it is intentionally not used in the compute path.
    del conv_b
    N, Cin, H, W = x_nchw.shape
    Cout = w_oihw.shape[0]
    Ho = (H + 2 - 3) // 2 + 1
    Wo = (W + 2 - 3) // 2 + 1
    howo = Ho * Wo
    M = N * howo

    # ---- wrapper glue: stride-2 tap planes (pad + ::2 slices, NCHW kept) ----
    x = x_nchw.astype(jnp.float32)
    xp = jnp.pad(x, ((0, 0), (0, 0), (1, 1), (1, 1)))       # (N, Cin, H+2, W+2)
    even_planes = []
    odd_planes = []
    for kw in range(3):
        cols = xp[:, :, :, kw:kw + 2 * Wo - 1:2]             # (N, Cin, H+2, Wo)
        e = cols[:, :, 0:2 * Ho + 1:2, :]                    # (N, Cin, Ho+1, Wo)
        o = cols[:, :, 1:2 * Ho:2, :]                        # (N, Cin, Ho,   Wo)
        even_planes.append(e.reshape(N, Cin, (Ho + 1) * Wo))
        odd_planes.append(o.reshape(N, Cin, howo))

    # weights: (Cout, Cin, kh, kw) -> (kh*3+kw, Cout, Cin), resident in VMEM
    w9 = jnp.transpose(w_oihw, (2, 3, 0, 1)).reshape(9, Cout, Cin)
    w9 = w9.astype(jnp.float32)

    plane_spec_e = pl.BlockSpec((1, Cin, (Ho + 1) * Wo), lambda n: (n, 0, 0))
    plane_spec_o = pl.BlockSpec((1, Cin, howo), lambda n: (n, 0, 0))

    cparams = pltpu.CompilerParams(
        dimension_semantics=("parallel",),          # no revisited outputs -> OK
        vmem_limit_bytes=40 * 1024 * 1024,          # headroom for v5e/v7x limits
    )

    # ---- kernel 1: per-image conv (9 MXU dots) + partial BN statistics ----
    y, s1, s2 = pl.pallas_call(
        functools.partial(_conv_stats_kernel, wo=Wo, howo=howo),
        out_shape=(
            jax.ShapeDtypeStruct((N, Cout, howo), jnp.float32),
            jax.ShapeDtypeStruct((N, Cout, 1), jnp.float32),
            jax.ShapeDtypeStruct((N, Cout, 1), jnp.float32),
        ),
        grid=(N,),
        in_specs=[
            pl.BlockSpec((9, Cout, Cin), lambda n: (0, 0, 0)),   # weights
            plane_spec_e, plane_spec_e, plane_spec_e,
            plane_spec_o, plane_spec_o, plane_spec_o,
        ],
        out_specs=(
            pl.BlockSpec((1, Cout, howo), lambda n: (n, 0, 0)),
            pl.BlockSpec((1, Cout, 1), lambda n: (n, 0, 0)),
            pl.BlockSpec((1, Cout, 1), lambda n: (n, 0, 0)),
        ),
        compiler_params=cparams,
    )(w9, *even_planes, *odd_planes)

    # ---- tiny per-channel reduction finish in JAX (Cout scalars only) ----
    # NOTE: E[y^2]-E[y]^2 in f32; fine here, consider shifted/Welford for huge M.
    cnt = jnp.float32(M)
    mean = jnp.sum(s1, axis=0) / cnt                          # (Cout, 1)
    var = jnp.maximum(jnp.sum(s2, axis=0) / cnt - mean * mean, 0.0)
    inv_std = lax.rsqrt(var + eps)
    scale = gamma.reshape(Cout, 1).astype(jnp.float32) * inv_std
    shift = beta.reshape(Cout, 1).astype(jnp.float32) - mean * scale

    # ---- kernel 2: fused BN affine + LeakyReLU, written in place over Y ----
    z = pl.pallas_call(
        functools.partial(_bn_lrelu_kernel, alpha=alpha),
        out_shape=jax.ShapeDtypeStruct((N, Cout, howo), jnp.float32),
        grid=(N,),
        in_specs=[
            pl.BlockSpec((1, Cout, howo), lambda n: (n, 0, 0)),
            pl.BlockSpec((Cout, 1), lambda n: (0, 0)),
            pl.BlockSpec((Cout, 1), lambda n: (0, 0)),
        ],
        out_specs=pl.BlockSpec((1, Cout, howo), lambda n: (n, 0, 0)),
        input_output_aliases={0: 0},          # Z overwrites Y (no extra HBM buf)
        compiler_params=cparams,
    )(y, scale, shift)

    # NCHW result is a pure metadata reshape (no transpose, no slice).
    return z.reshape(N, Cout, Ho, Wo)


if __name__ == "__main__":
    key = jax.random.PRNGKey(0)
    N, Cin, H, W, Cout = 2, 4, 16, 16, 8
    alpha = 0.1

    k1, k2, k3, k4, k5 = jax.random.split(key, 5)
    x = jax.random.normal(k1, (N, Cin, H, W), jnp.float32)
    w = 0.1 * jax.random.normal(k2, (Cout, Cin, 3, 3), jnp.float32)
    b = 0.1 * jax.random.normal(k3, (Cout,), jnp.float32)
    gamma = 1.0 + 0.1 * jax.random.normal(k4, (Cout,), jnp.float32)
    beta = 0.1 * jax.random.normal(k5, (Cout,), jnp.float32)

    out = conv_bn_lrelu(x, w, b, gamma, beta, alpha=alpha)
    out = jax.block_until_ready(out)

    # silent correctness check against a pure-JAX reference (bias included in
    # the reference conv; it cancels under training-mode BN)
    ref_conv = lax.conv_general_dilated(
        x, w, window_strides=(2, 2), padding=((1, 1), (1, 1)),
        dimension_numbers=("NCHW", "OIHW", "NCHW"),
    ) + b.reshape(1, Cout, 1, 1)
    m = jnp.mean(ref_conv, axis=(0, 2, 3), keepdims=True)
    v = jnp.mean((ref_conv - m) ** 2, axis=(0, 2, 3), keepdims=True)
    ref = (ref_conv - m) / jnp.sqrt(v + 1e-5) * gamma.reshape(1, Cout, 1, 1) \
        + beta.reshape(1, Cout, 1, 1)
    ref = jnp.where(ref >= 0, ref, alpha * ref)

    assert out.shape == (N, Cout, H // 2, W // 2), out.shape
    assert jnp.allclose(out, ref, atol=1e-4, rtol=1e-4), \
        float(jnp.max(jnp.abs(out - ref)))
    print("KERNEL_OK")
</pallas_src>

<mosaic_0001>
module attributes {stable_mosaic.version = 11 : i64} {
  func.func @_conv_stats_kernel(%arg0: i32, %arg1: memref<9x8x4xf32, #tpu.memory_space<vmem>>, %arg2: memref<1x4x72xf32, #tpu.memory_space<vmem>>, %arg3: memref<1x4x72xf32, #tpu.memory_space<vmem>>, %arg4: memref<1x4x72xf32, #tpu.memory_space<vmem>>, %arg5: memref<1x4x64xf32, #tpu.memory_space<vmem>>, %arg6: memref<1x4x64xf32, #tpu.memory_space<vmem>>, %arg7: memref<1x4x64xf32, #tpu.memory_space<vmem>>, %arg8: memref<1x8x64xf32, #tpu.memory_space<vmem>>, %arg9: memref<1x8x1xf32, #tpu.memory_space<vmem>>, %arg10: memref<1x8x1xf32, #tpu.memory_space<vmem>>) attributes {dimension_semantics = [#tpu.dimension_semantics<parallel>], iteration_bounds = array<i64: 2>, scalar_prefetch = 0 : i64, scratch_operands = 0 : i64, tpu.core_type = #tpu.core_type<tc>, window_params = [{pipeline_mode = #tpu.pipeline_mode<synchronous>, transform_indices = @transform_0, window_bounds = array<i64: 9, 8, 4>}, {transform_indices = @transform_1, window_bounds = array<i64: 1, 4, 72>}, {transform_indices = @transform_2, window_bounds = array<i64: 1, 4, 72>}, {transform_indices = @transform_3, window_bounds = array<i64: 1, 4, 72>}, {transform_indices = @transform_4, window_bounds = array<i64: 1, 4, 64>}, {transform_indices = @transform_5, window_bounds = array<i64: 1, 4, 64>}, {transform_indices = @transform_6, window_bounds = array<i64: 1, 4, 64>}, {transform_indices = @transform_7, window_bounds = array<i64: 1, 8, 64>}, {transform_indices = @transform_8, window_bounds = array<i64: 1, 8, 1>}, {transform_indices = @transform_9, window_bounds = array<i64: 1, 8, 1>}]} {
    %c0 = arith.constant 0 : index
    %c0_0 = arith.constant 0 : index
    %c0_1 = arith.constant 0 : index
    %0 = vector.load %arg2[%c0, %c0_0, %c0_1] : memref<1x4x72xf32, #tpu.memory_space<vmem>>, vector<1x4x72xf32>
    %1 = vector.shape_cast %0 : vector<1x4x72xf32> to vector<4x72xf32>
    %c0_2 = arith.constant 0 : index
    %c0_3 = arith.constant 0 : index
    %c0_4 = arith.constant 0 : index
    %2 = vector.load %arg5[%c0_2, %c0_3, %c0_4] : memref<1x4x64xf32, #tpu.memory_space<vmem>>, vector<1x4x64xf32>
    %3 = vector.shape_cast %2 : vector<1x4x64xf32> to vector<4x64xf32>
    %4 = vector.extract_strided_slice %1 {offsets = [0, 0], sizes = [4, 64], strides = [1, 1]} : vector<4x72xf32> to vector<4x64xf32>
    %5 = vector.extract_strided_slice %1 {offsets = [0, 8], sizes = [4, 64], strides = [1, 1]} : vector<4x72xf32> to vector<4x64xf32>
    %c0_5 = arith.constant 0 : index
    %c0_6 = arith.constant 0 : index
    %c0_7 = arith.constant 0 : index
    %6 = vector.load %arg1[%c0_5, %c0_6, %c0_7] : memref<9x8x4xf32, #tpu.memory_space<vmem>>, vector<1x8x4xf32>
    %7 = vector.shape_cast %6 : vector<1x8x4xf32> to vector<8x4xf32>
    %cst = arith.constant dense<0.000000e+00> : vector<8x64xf32>
    %8 = tpu.matmul %7, %4, %cst {dimension_numbers = #tpu.dot_dimension_numbers<[1], [0], [0], [1], [0, 0, 1, 1], [], []>} : vector<8x4xf32>, vector<4x64xf32>, vector<8x64xf32> -> vector<8x64xf32>
    %c3 = arith.constant 3 : index
    %c0_8 = arith.constant 0 : index
    %c0_9 = arith.constant 0 : index
    %9 = vector.load %arg1[%c3, %c0_8, %c0_9] : memref<9x8x4xf32, #tpu.memory_space<vmem>>, vector<1x8x4xf32>
    %10 = vector.shape_cast %9 : vector<1x8x4xf32> to vector<8x4xf32>
    %cst_10 = arith.constant dense<0.000000e+00> : vector<8x64xf32>
    %11 = tpu.matmul %10, %3, %cst_10 {dimension_numbers = #tpu.dot_dimension_numbers<[1], [0], [0], [1], [0, 0, 1, 1], [], []>} : vector<8x4xf32>, vector<4x64xf32>, vector<8x64xf32> -> vector<8x64xf32>
    %12 = arith.addf %8, %11 : vector<8x64xf32>
    %c6 = arith.constant 6 : index
    %c0_11 = arith.constant 0 : index
    %c0_12 = arith.constant 0 : index
    %13 = vector.load %arg1[%c6, %c0_11, %c0_12] : memref<9x8x4xf32, #tpu.memory_space<vmem>>, vector<1x8x4xf32>
    %14 = vector.shape_cast %13 : vector<1x8x4xf32> to vector<8x4xf32>
    %cst_13 = arith.constant dense<0.000000e+00> : vector<8x64xf32>
    %15 = tpu.matmul %14, %5, %cst_13 {dimension_numbers = #tpu.dot_dimension_numbers<[1], [0], [0], [1], [0, 0, 1, 1], [], []>} : vector<8x4xf32>, vector<4x64xf32>, vector<8x64xf32> -> vector<8x64xf32>
    %16 = arith.addf %12, %15 : vector<8x64xf32>
    %c0_14 = arith.constant 0 : index
    %c0_15 = arith.constant 0 : index
    %c0_16 = arith.constant 0 : index
    %17 = vector.load %arg3[%c0_14, %c0_15, %c0_16] : memref<1x4x72xf32, #tpu.memory_space<vmem>>, vector<1x4x72xf32>
    %18 = vector.shape_cast %17 : vector<1x4x72xf32> to vector<4x72xf32>
    %c0_17 = arith.constant 0 : index
    %c0_18 = arith.constant 0 : index
    %c0_19 = arith.constant 0 : index
    %19 = vector.load %arg6[%c0_17, %c0_18, %c0_19] : memref<1x4x64xf32, #tpu.memory_space<vmem>>, vector<1x4x64xf32>
    %20 = vector.shape_cast %19 : vector<1x4x64xf32> to vector<4x64xf32>
    %21 = vector.extract_strided_slice %18 {offsets = [0, 0], sizes = [4, 64], strides = [1, 1]} : vector<4x72xf32> to vector<4x64xf32>
    %22 = vector.extract_strided_slice %18 {offsets = [0, 8], sizes = [4, 64], strides = [1, 1]} : vector<4x72xf32> to vector<4x64xf32>
    %c1 = arith.constant 1 : index
    %c0_20 = arith.constant 0 : index
    %c0_21 = arith.constant 0 : index
    %23 = vector.load %arg1[%c1, %c0_20, %c0_21] : memref<9x8x4xf32, #tpu.memory_space<vmem>>, vector<1x8x4xf32>
    %24 = vector.shape_cast %23 : vector<1x8x4xf32> to vector<8x4xf32>
    %cst_22 = arith.constant dense<0.000000e+00> : vector<8x64xf32>
    %25 = tpu.matmul %24, %21, %cst_22 {dimension_numbers = #tpu.dot_dimension_numbers<[1], [0], [0], [1], [0, 0, 1, 1], [], []>} : vector<8x4xf32>, vector<4x64xf32>, vector<8x64xf32> -> vector<8x64xf32>
    %26 = arith.addf %16, %25 : vector<8x64xf32>
    %c4 = arith.constant 4 : index
    %c0_23 = arith.constant 0 : index
    %c0_24 = arith.constant 0 : index
    %27 = vector.load %arg1[%c4, %c0_23, %c0_24] : memref<9x8x4xf32, #tpu.memory_space<vmem>>, vector<1x8x4xf32>
    %28 = vector.shape_cast %27 : vector<1x8x4xf32> to vector<8x4xf32>
    %cst_25 = arith.constant dense<0.000000e+00> : vector<8x64xf32>
    %29 = tpu.matmul %28, %20, %cst_25 {dimension_numbers = #tpu.dot_dimension_numbers<[1], [0], [0], [1], [0, 0, 1, 1], [], []>} : vector<8x4xf32>, vector<4x64xf32>, vector<8x64xf32> -> vector<8x64xf32>
    %30 = arith.addf %26, %29 : vector<8x64xf32>
    %c7 = arith.constant 7 : index
    %c0_26 = arith.constant 0 : index
    %c0_27 = arith.constant 0 : index
    %31 = vector.load %arg1[%c7, %c0_26, %c0_27] : memref<9x8x4xf32, #tpu.memory_space<vmem>>, vector<1x8x4xf32>
    %32 = vector.shape_cast %31 : vector<1x8x4xf32> to vector<8x4xf32>
    %cst_28 = arith.constant dense<0.000000e+00> : vector<8x64xf32>
    %33 = tpu.matmul %32, %22, %cst_28 {dimension_numbers = #tpu.dot_dimension_numbers<[1], [0], [0], [1], [0, 0, 1, 1], [], []>} : vector<8x4xf32>, vector<4x64xf32>, vector<8x64xf32> -> vector<8x64xf32>
    %34 = arith.addf %30, %33 : vector<8x64xf32>
    %c0_29 = arith.constant 0 : index
    %c0_30 = arith.constant 0 : index
    %c0_31 = arith.constant 0 : index
    %35 = vector.load %arg4[%c0_29, %c0_30, %c0_31] : memref<1x4x72xf32, #tpu.memory_space<vmem>>, vector<1x4x72xf32>
    %36 = vector.shape_cast %35 : vector<1x4x72xf32> to vector<4x72xf32>
    %c0_32 = arith.constant 0 : index
    %c0_33 = arith.constant 0 : index
    %c0_34 = arith.constant 0 : index
    %37 = vector.load %arg7[%c0_32, %c0_33, %c0_34] : memref<1x4x64xf32, #tpu.memory_space<vmem>>, vector<1x4x64xf32>
    %38 = vector.shape_cast %37 : vector<1x4x64xf32> to vector<4x64xf32>
    %39 = vector.extract_strided_slice %36 {offsets = [0, 0], sizes = [4, 64], strides = [1, 1]} : vector<4x72xf32> to vector<4x64xf32>
    %40 = vector.extract_strided_slice %36 {offsets = [0, 8], sizes = [4, 64], strides = [1, 1]} : vector<4x72xf32> to vector<4x64xf32>
    %c2 = arith.constant 2 : index
    %c0_35 = arith.constant 0 : index
    %c0_36 = arith.constant 0 : index
    %41 = vector.load %arg1[%c2, %c0_35, %c0_36] : memref<9x8x4xf32, #tpu.memory_space<vmem>>, vector<1x8x4xf32>
    %42 = vector.shape_cast %41 : vector<1x8x4xf32> to vector<8x4xf32>
    %cst_37 = arith.constant dense<0.000000e+00> : vector<8x64xf32>
    %43 = tpu.matmul %42, %39, %cst_37 {dimension_numbers = #tpu.dot_dimension_numbers<[1], [0], [0], [1], [0, 0, 1, 1], [], []>} : vector<8x4xf32>, vector<4x64xf32>, vector<8x64xf32> -> vector<8x64xf32>
    %44 = arith.addf %34, %43 : vector<8x64xf32>
    %c5 = arith.constant 5 : index
    %c0_38 = arith.constant 0 : index
    %c0_39 = arith.constant 0 : index
    %45 = vector.load %arg1[%c5, %c0_38, %c0_39] : memref<9x8x4xf32, #tpu.memory_space<vmem>>, vector<1x8x4xf32>
    %46 = vector.shape_cast %45 : vector<1x8x4xf32> to vector<8x4xf32>
    %cst_40 = arith.constant dense<0.000000e+00> : vector<8x64xf32>
    %47 = tpu.matmul %46, %38, %cst_40 {dimension_numbers = #tpu.dot_dimension_numbers<[1], [0], [0], [1], [0, 0, 1, 1], [], []>} : vector<8x4xf32>, vector<4x64xf32>, vector<8x64xf32> -> vector<8x64xf32>
    %48 = arith.addf %44, %47 : vector<8x64xf32>
    %c8 = arith.constant 8 : index
    %c0_41 = arith.constant 0 : index
    %c0_42 = arith.constant 0 : index
    %49 = vector.load %arg1[%c8, %c0_41, %c0_42] : memref<9x8x4xf32, #tpu.memory_space<vmem>>, vector<1x8x4xf32>
    %50 = vector.shape_cast %49 : vector<1x8x4xf32> to vector<8x4xf32>
    %cst_43 = arith.constant dense<0.000000e+00> : vector<8x64xf32>
    %51 = tpu.matmul %50, %40, %cst_43 {dimension_numbers = #tpu.dot_dimension_numbers<[1], [0], [0], [1], [0, 0, 1, 1], [], []>} : vector<8x4xf32>, vector<4x64xf32>, vector<8x64xf32> -> vector<8x64xf32>
    %52 = arith.addf %48, %51 : vector<8x64xf32>
    %c0_44 = arith.constant 0 : index
    %c0_45 = arith.constant 0 : index
    %c0_46 = arith.constant 0 : index
    %53 = vector.load %arg8[%c0_44, %c0_45, %c0_46] : memref<1x8x64xf32, #tpu.memory_space<vmem>>, vector<1x8x64xf32>
    %54 = vector.shape_cast %53 : vector<1x8x64xf32> to vector<8x64xf32>
    %55 = vector.shape_cast %52 : vector<8x64xf32> to vector<1x8x64xf32>
    tpu.vector_store %arg8[%c0_44, %c0_45, %c0_46], %55 {strides = array<i32>} : memref<1x8x64xf32, #tpu.memory_space<vmem>>, vector<1x8x64xf32>,
    %cst_47 = arith.constant dense<0.000000e+00> : vector<8xf32>
    %56 = vector.multi_reduction <add>, %52, %cst_47 [1] : vector<8x64xf32> to vector<8xf32>
    %57 = vector.shape_cast %56 : vector<8xf32> to vector<8x1xf32>
    %c0_48 = arith.constant 0 : index
    %c0_49 = arith.constant 0 : index
    %c0_50 = arith.constant 0 : index
    %58 = vector.load %arg9[%c0_48, %c0_49, %c0_50] : memref<1x8x1xf32, #tpu.memory_space<vmem>>, vector<1x8x1xf32>
    %59 = vector.shape_cast %58 : vector<1x8x1xf32> to vector<8x1xf32>
    %60 = vector.shape_cast %57 : vector<8x1xf32> to vector<1x8x1xf32>
    tpu.vector_store %arg9[%c0_48, %c0_49, %c0_50], %60 {strides = array<i32>} : memref<1x8x1xf32, #tpu.memory_space<vmem>>, vector<1x8x1xf32>,
    %61 = arith.mulf %52, %52 : vector<8x64xf32>
    %cst_51 = arith.constant dense<0.000000e+00> : vector<8xf32>
    %62 = vector.multi_reduction <add>, %61, %cst_51 [1] : vector<8x64xf32> to vector<8xf32>
    %63 = vector.shape_cast %62 : vector<8xf32> to vector<8x1xf32>
    %c0_52 = arith.constant 0 : index
    %c0_53 = arith.constant 0 : index
    %c0_54 = arith.constant 0 : index
    %64 = vector.load %arg10[%c0_52, %c0_53, %c0_54] : memref<1x8x1xf32, #tpu.memory_space<vmem>>, vector<1x8x1xf32>
    %65 = vector.shape_cast %64 : vector<1x8x1xf32> to vector<8x1xf32>
    %66 = vector.shape_cast %63 : vector<8x1xf32> to vector<1x8x1xf32>
    tpu.vector_store %arg10[%c0_52, %c0_53, %c0_54], %66 {strides = array<i32>} : memref<1x8x1xf32, #tpu.memory_space<vmem>>, vector<1x8x1xf32>,
    return
  }
  func.func @transform_0(%arg0: i32) -> (i32, i32, i32) {
    %c0_i32 = arith.constant 0 : i32
    %c0_i32_0 = arith.constant 0 : i32
    %c0_i32_1 = arith.constant 0 : i32
    %c0_i32_2 = arith.constant 0 : i32
    return %c0_i32, %c0_i32_0, %c0_i32_1 : i32, i32, i32
  }
  func.func @transform_1(%arg0: i32) -> (i32, i32, i32) {
    %c0_i32 = arith.constant 0 : i32
    %c0_i32_0 = arith.constant 0 : i32
    %c0_i32_1 = arith.constant 0 : i32
    return %arg0, %c0_i32, %c0_i32_0 : i32, i32, i32
  }
  func.func @transform_2(%arg0: i32) -> (i32, i32, i32) {
    %c0_i32 = arith.constant 0 : i32
    %c0_i32_0 = arith.constant 0 : i32
    %c0_i32_1 = arith.constant 0 : i32
    return %arg0, %c0_i32, %c0_i32_0 : i32, i32, i32
  }
  func.func @transform_3(%arg0: i32) -> (i32, i32, i32) {
    %c0_i32 = arith.constant 0 : i32
    %c0_i32_0 = arith.constant 0 : i32
    %c0_i32_1 = arith.constant 0 : i32
    return %arg0, %c0_i32, %c0_i32_0 : i32, i32, i32
  }
  func.func @transform_4(%arg0: i32) -> (i32, i32, i32) {
    %c0_i32 = arith.constant 0 : i32
    %c0_i32_0 = arith.constant 0 : i32
    %c0_i32_1 = arith.constant 0 : i32
    return %arg0, %c0_i32, %c0_i32_0 : i32, i32, i32
  }
  func.func @transform_5(%arg0: i32) -> (i32, i32, i32) {
    %c0_i32 = arith.constant 0 : i32
    %c0_i32_0 = arith.constant 0 : i32
    %c0_i32_1 = arith.constant 0 : i32
    return %arg0, %c0_i32, %c0_i32_0 : i32, i32, i32
  }
  func.func @transform_6(%arg0: i32) -> (i32, i32, i32) {
    %c0_i32 = arith.constant 0 : i32
    %c0_i32_0 = arith.constant 0 : i32
    %c0_i32_1 = arith.constant 0 : i32
    return %arg0, %c0_i32, %c0_i32_0 : i32, i32, i32
  }
  func.func @transform_7(%arg0: i32) -> (i32, i32, i32) {
    %c0_i32 = arith.constant 0 : i32
    %c0_i32_0 = arith.constant 0 : i32
    %c0_i32_1 = arith.constant 0 : i32
    return %arg0, %c0_i32, %c0_i32_0 : i32, i32, i32
  }
  func.func @transform_8(%arg0: i32) -> (i32, i32, i32) {
    %c0_i32 = arith.constant 0 : i32
    %c0_i32_0 = arith.constant 0 : i32
    %c0_i32_1 = arith.constant 0 : i32
    return %arg0, %c0_i32, %c0_i32_0 : i32, i32, i32
  }
  func.func @transform_9(%arg0: i32) -> (i32, i32, i32) {
    %c0_i32 = arith.constant 0 : i32
    %c0_i32_0 = arith.constant 0 : i32
    %c0_i32_1 = arith.constant 0 : i32
    return %arg0, %c0_i32, %c0_i32_0 : i32, i32, i32
  }
}

module attributes {stable_mosaic.version = 11 : i64} {
  func.func @_bn_lrelu_kernel(%arg0: i32, %arg1: memref<1x8x64xf32, #tpu.memory_space<vmem>>, %arg2: memref<8x1xf32, #tpu.memory_space<vmem>>, %arg3: memref<8x1xf32, #tpu.memory_space<vmem>>, %arg4: memref<1x8x64xf32, #tpu.memory_space<vmem>>) attributes {dimension_semantics = [#tpu.dimension_semantics<parallel>], iteration_bounds = array<i64: 2>, scalar_prefetch = 0 : i64, scratch_operands = 0 : i64, tpu.core_type = #tpu.core_type<tc>, window_params = [{transform_indices = @transform_0, window_bounds = array<i64: 1, 8, 64>}, {pipeline_mode = #tpu.pipeline_mode<synchronous>, transform_indices = @transform_1, window_bounds = array<i64: 8, 1>}, {pipeline_mode = #tpu.pipeline_mode<synchronous>, transform_indices = @transform_2, window_bounds = array<i64: 8, 1>}, {transform_indices = @transform_3, window_bounds = array<i64: 1, 8, 64>}]} {
    %c0 = arith.constant 0 : index
    %c0_0 = arith.constant 0 : index
    %c0_1 = arith.constant 0 : index
    %0 = vector.load %arg1[%c0, %c0_0, %c0_1] : memref<1x8x64xf32, #tpu.memory_space<vmem>>, vector<1x8x64xf32>
    %1 = vector.shape_cast %0 : vector<1x8x64xf32> to vector<8x64xf32>
    %c0_2 = arith.constant 0 : index
    %c0_3 = arith.constant 0 : index
    %2 = vector.load %arg2[%c0_2, %c0_3] : memref<8x1xf32, #tpu.memory_space<vmem>>, vector<8x1xf32>
    %3 = vector.broadcast %2 : vector<8x1xf32> to vector<8x64xf32>
    %4 = arith.mulf %1, %3 : vector<8x64xf32>
    %c0_4 = arith.constant 0 : index
    %c0_5 = arith.constant 0 : index
    %5 = vector.load %arg3[%c0_4, %c0_5] : memref<8x1xf32, #tpu.memory_space<vmem>>, vector<8x1xf32>
    %6 = vector.broadcast %5 : vector<8x1xf32> to vector<8x64xf32>
    %7 = arith.addf %4, %6 : vector<8x64xf32>
    %cst = arith.constant 0.000000e+00 : f32
    %8 = vector.broadcast %cst : f32 to vector<8x64xf32>
    %9 = arith.cmpf oge, %7, %8 : vector<8x64xf32>
    %cst_6 = arith.constant 1.000000e-01 : f32
    %10 = vector.broadcast %cst_6 : f32 to vector<8x64xf32>
    %11 = arith.mulf %10, %7 : vector<8x64xf32>
    %12 = arith.select %9, %7, %11 : vector<8x64xi1>, vector<8x64xf32>
    %c0_7 = arith.constant 0 : index
    %c0_8 = arith.constant 0 : index
    %c0_9 = arith.constant 0 : index
    %13 = vector.load %arg4[%c0_7, %c0_8, %c0_9] : memref<1x8x64xf32, #tpu.memory_space<vmem>>, vector<1x8x64xf32>
    %14 = vector.shape_cast %13 : vector<1x8x64xf32> to vector<8x64xf32>
    %15 = vector.shape_cast %12 : vector<8x64xf32> to vector<1x8x64xf32>
    tpu.vector_store %arg4[%c0_7, %c0_8, %c0_9], %15 {strides = array<i32>} : memref<1x8x64xf32, #tpu.memory_space<vmem>>, vector<1x8x64xf32>,
    return
  }
  func.func @transform_0(%arg0: i32) -> (i32, i32, i32) {
    %c0_i32 = arith.constant 0 : i32
    %c0_i32_0 = arith.constant 0 : i32
    %c0_i32_1 = arith.constant 0 : i32
    return %arg0, %c0_i32, %c0_i32_0 : i32, i32, i32
  }
  func.func @transform_1(%arg0: i32) -> (i32, i32) {
    %c0_i32 = arith.constant 0 : i32
    %c0_i32_0 = arith.constant 0 : i32
    %c0_i32_1 = arith.constant 0 : i32
    return %c0_i32, %c0_i32_0 : i32, i32
  }
  func.func @transform_2(%arg0: i32) -> (i32, i32) {
    %c0_i32 = arith.constant 0 : i32
    %c0_i32_0 = arith.constant 0 : i32
    %c0_i32_1 = arith.constant 0 : i32
    return %c0_i32, %c0_i32_0 : i32, i32
  }
  func.func @transform_3(%arg0: i32) -> (i32, i32, i32) {
    %c0_i32 = arith.constant 0 : i32
    %c0_i32_0 = arith.constant 0 : i32
    %c0_i32_1 = arith.constant 0 : i32
    return %arg0, %c0_i32, %c0_i32_0 : i32, i32, i32
  }
}

</mosaic_0001>

<llo_original>
// kernel: conv_bn_lrelu.3
$region0: #{conv_bn_lrelu.3}
  #allocation0 [shape = 'u32[]', space=smem, size = 0x4, offset = 0x4, fixed_abs, tag = 'smem constant byte address 0x4 - core index']
  #allocation1 [shape = 'u32[144,128]{1,0:T(1,128)}', space=vmem, size = 0x12000, scoped, tag = 'internal scratch']
  %s0 = inlined_call_operand.vmem [shape: f32[2,8,64], index: 0, kind: input, shape index: {}, may-alias: {0,3}]
  %s1 = inlined_call_operand.vmem [shape: f32[8,1], index: 1, kind: input, shape index: {}]
  %s2 = inlined_call_operand.vmem [shape: f32[8,1], index: 2, kind: input, shape index: {}]
  %s3 = inlined_call_operand.vmem [shape: f32[2,8,64], index: 3, kind: output, shape index: {}, may-alias: {0,3}]
  %s4 = sld [smem:[#allocation0]]
  $region45: #{conv_bn_lrelu.3} parent=0
    _
  %s6 = ssub.s32 1, %s4
  %s7 = scalar_select 0, %s6, %s4
  loop: start=0, step=1, limit=4
  $region2: #{conv_bn_lrelu.3} parent=0 // loop_pre_header
    _
  $region3: #{conv_bn_lrelu.3} parent=0 // loop_header
    %s9 = sphi 0, %s13
    %p10 = scmp.ge.s32.totalorder %s9, 4
    %s19 = sphi 0, %s21
    %s22 = sphi 0, %s19
    %s23 = sphi 0, %s22
    %s39 = sphi 0, %s23
    %s43 = sphi 0, %s43
    %s45 = sphi 0, %s43
    %s46 = sphi 0, %s45
    %s60 = sphi 0, %s46
    %s64 = sphi 0, %s64
    %s66 = sphi 0, %s64
    %s67 = sphi 0, %s66
    %s81 = sphi 0, %s67
    %s87 = sphi 0, %s89
    %s90 = sphi 0, %s87
    %s91 = sphi 0, %s90
    %s107 = sphi 0, %s91
  $region4: #{conv_bn_lrelu.3} parent=0 // loop_header_branch
    %12 = sbr.rel (%p10) target = $region8
  $region5: #{conv_bn_lrelu.3} parent=0 // loop_body
    %s14 = ssub.s32 %s9, 1
    %s15 = ssub.s32 %s9, 2
    %s16 = sadd.s32 %s9, 1
    %s17 = ssub.s32 %s9, %s16
    %p18 = scmp.eq.s32.totalorder %s17, 0
    %s20 = sadd.s32 %s19, 1
    %s21 = scalar_select %p18, %s19, %s20
    %p24 = pneg %p18
    %p25 = scmp.eq.s32.totalorder %s9, 1
    %p26 = por %p24, %p25
    %p27 = scmp.ne.s32.totalorder %s19, %s22
    %p28 = scmp.eq.s32.totalorder %s9, 0
    %p29 = por %p27, %p28
    %p30 = scmp.ne.s32.totalorder %s19, %s22
    %p31 = scmp.eq.s32.totalorder %s14, 1
    %p32 = por %p30, %p31
    %p33 = scmp.ne.s32.totalorder %s22, %s23
    %p34 = scmp.eq.s32.totalorder %s14, 0
    %p35 = por %p33, %p34
    %p36 = scmp.ne.s32.totalorder %s22, %s23
    %p37 = scmp.eq.s32.totalorder %s15, 1
    %p38 = por %p36, %p37
    %p40 = scmp.ne.s32.totalorder %s23, %s39
    %p41 = scmp.eq.s32.totalorder %s15, 0
    %p42 = por %p40, %p41
    %s44 = sadd.s32 %s43, 1
    %p47 = scmp.eq.s32.totalorder %s9, 1
    %p48 = scmp.ne.s32.totalorder %s43, %s45
    %p49 = scmp.eq.s32.totalorder %s9, 0
    %p50 = por %p48, %p49
    %p51 = scmp.ne.s32.totalorder %s43, %s45
    %p52 = scmp.eq.s32.totalorder %s14, 1
    %p53 = por %p51, %p52
    %p54 = scmp.ne.s32.totalorder %s45, %s46
    %p55 = scmp.eq.s32.totalorder %s14, 0
    %p56 = por %p54, %p55
    %p57 = scmp.ne.s32.totalorder %s45, %s46
    %p58 = scmp.eq.s32.totalorder %s15, 1
    %p59 = por %p57, %p58
    %p61 = scmp.ne.s32.totalorder %s46, %s60
    %p62 = scmp.eq.s32.totalorder %s15, 0
    %p63 = por %p61, %p62
    %s65 = sadd.s32 %s64, 1
    %p68 = scmp.eq.s32.totalorder %s9, 1
    %p69 = scmp.ne.s32.totalorder %s64, %s66
    %p70 = scmp.eq.s32.totalorder %s9, 0
    %p71 = por %p69, %p70
    %p72 = scmp.ne.s32.totalorder %s64, %s66
    %p73 = scmp.eq.s32.totalorder %s14, 1
    %p74 = por %p72, %p73
    %p75 = scmp.ne.s32.totalorder %s66, %s67
    %p76 = scmp.eq.s32.totalorder %s14, 0
    %p77 = por %p75, %p76
    %p78 = scmp.ne.s32.totalorder %s66, %s67
    %p79 = scmp.eq.s32.totalorder %s15, 1
    %p80 = por %p78, %p79
    %p82 = scmp.ne.s32.totalorder %s67, %s81
    %p83 = scmp.eq.s32.totalorder %s15, 0
    %p84 = por %p82, %p83
    %s85 = ssub.s32 %s9, %s16
    %p86 = scmp.eq.s32.totalorder %s85, 0
    %s88 = sadd.s32 %s87, 1
    %s89 = scalar_select %p86, %s87, %s88
    %p92 = pneg %p86
    %p93 = scmp.eq.s32.totalorder %s9, 1
    %p94 = por %p92, %p93
    %p95 = scmp.ne.s32.totalorder %s87, %s90
    %p96 = scmp.eq.s32.totalorder %s9, 0
    %p97 = por %p95, %p96
    %p98 = scmp.ne.s32.totalorder %s87, %s90
    %p99 = scmp.eq.s32.totalorder %s14, 1
    %p100 = por %p98, %p99
    %p101 = scmp.ne.s32.totalorder %s90, %s91
    %p102 = scmp.eq.s32.totalorder %s14, 0
    %p103 = por %p101, %p102
    %p104 = scmp.ne.s32.totalorder %s90, %s91
    %p105 = scmp.eq.s32.totalorder %s15, 1
    %p106 = por %p104, %p105
    %p108 = scmp.ne.s32.totalorder %s91, %s107
    %p109 = scmp.eq.s32.totalorder %s15, 0
    %p110 = por %p108, %p109
    %p111 = scmp.le.s32.totalorder 1, %s9
    %p112 = scmp.lt.s32.totalorder %s9, 3
    %p113 = pnand %p111, %p112
    %p114 = pneg %p113
    // Predicated region
    $region9: #{conv_bn_lrelu.3} parent=5 // pred_check
      _
    $region10: #{conv_bn_lrelu.3} parent=5 // pred_check_branch
      %116 = sbr.rel (%p113) target = $region12
    $region11: #{conv_bn_lrelu.3} parent=5 // pred_region
      %s117 = ssub.s32 %s9, 1
      // Predicated region
      $region13: #{conv_bn_lrelu.3} parent=11 // pred_check
        %p118 = pneg %p56
      $region14: #{conv_bn_lrelu.3} parent=11 // pred_check_branch
        %120 = sbr.rel (%p118) target = $region16
      $region15: #{conv_bn_lrelu.3} parent=11 // pred_region
        _
      $region16: #{conv_bn_lrelu.3} parent=11 // pred_fallthru
        _
      // Predicated region
      $region17: #{conv_bn_lrelu.3} parent=11 // pred_check
        %p121 = pneg %p77
      $region18: #{conv_bn_lrelu.3} parent=11 // pred_check_branch
        %123 = sbr.rel (%p121) target = $region20
      $region19: #{conv_bn_lrelu.3} parent=11 // pred_region
        _
      $region20: #{conv_bn_lrelu.3} parent=11 // pred_fallthru
        _
    $region12: #{conv_bn_lrelu.3} parent=5 // pred_fallthru
      _
    %p124 = scmp.lt.s32.totalorder %s9, 2
    // Predicated region
    $region21: #{conv_bn_lrelu.3} parent=5 // pred_check
      %p125 = pneg %p124
    $region22: #{conv_bn_lrelu.3} parent=5 // pred_check_branch
      %127 = sbr.rel (%p125) target = $region24
    $region23: #{conv_bn_lrelu.3} parent=5 // pred_region
      // Predicated region
      $region25: #{conv_bn_lrelu.3} parent=23 // pred_check
        %p128 = pneg %p29
      $region26: #{conv_bn_lrelu.3} parent=23 // pred_check_branch
        %130 = sbr.rel (%p128) target = $region28
      $region27: #{conv_bn_lrelu.3} parent=23 // pred_region
        %p131 = scmp.lt.s32.totalorder %s9, 1
        %s132 = scalar_select %p131, %s9, 1
        %s133 = smul.addr %s132, 8
        %s134 = scalar_lea.vmem %s0, %s133
      $region28: #{conv_bn_lrelu.3} parent=23 // pred_fallthru
        _
    $region24: #{conv_bn_lrelu.3} parent=5 // pred_fallthru
      _
    %p135 = scmp.le.s32.totalorder 1, %s9
    %p136 = scmp.lt.s32.totalorder %s9, 3
    %p137 = pnand %p135, %p136
    %p138 = pneg %p137
    // Predicated region
    $region29: #{conv_bn_lrelu.3} parent=5 // pred_check
      _
    $region30: #{conv_bn_lrelu.3} parent=5 // pred_check_branch
      %140 = sbr.rel (%p137) target = $region32
    $region31: #{conv_bn_lrelu.3} parent=5 // pred_region
      %s141 = ssub.s32 %s9, 1
      %p142 = scmp.lt.s32.totalorder %s14, 1
      %s143 = scalar_select %p142, %s14, 1
      %s144 = smul.addr %s143, 8
      %s145 = scalar_lea.vmem %s0, %s144
      %p146 = pneg %p35
      %p147 = pneg %p32
      %p148 = pneg %p56
      %p149 = pneg %p53
      %p150 = pneg %p77
      %p151 = pneg %p74
      %p152 = pneg %p103
      %p153 = pneg %p100
      %p154 = scmp.lt.s32.totalorder %s14, 1
      %s155 = scalar_select %p154, %s14, 1
      %s156 = smul.addr %s155, 8
      %s157 = scalar_lea.vmem %s3, %s156
      %p158 = scmp.lt.s32.totalorder %s14, 1
      %s159 = scalar_select %p158, %s14, 1
      %s160 = smul.addr %s159, 8
      %s161 = scalar_lea.vmem %s0, %s160
      %p162 = scmp.lt.s32.totalorder %s14, 1
      %s163 = scalar_select %p162, %s14, 1
      %s164 = smul.addr %s163, 8
      %s165 = scalar_lea.vmem %s3, %s164
      %v166 = vld [vmem:[%s161] sm:$0xff]
      %v167 = vld [vmem:[%s1] sm:$0xff]
      %169 = vset.pattern.permute.xlu0 0
      %170 = vperm.xlu0 %169, %v167
      %v171 = vpop.permute.xlu0 %170
      %v173 = vmul.f32 %v166, %v171
      %v174 = vld [vmem:[%s2] sm:$0xff]
      %176 = vset.pattern.permute.xlu0 0
      %177 = vperm.xlu0 %176, %v174
      %v178 = vpop.permute.xlu0 %177
      %v180 = vadd.f32 %v173, %v178
      %vm181 = vcmp.ge.f32.partialorder %v180, 0.0
      %v182 = vmul.f32 %v180, 0.1
      %v183 = vsel %vm181, %v180, %v182
      %vm184 = vcmask 523264
      %185 = vst.msk [vmem:[%s165] sm:$0xff] %vm184, %v183
      %p186 = scmp.lt.s32.totalorder %s14, 1
      %s187 = scalar_select %p186, %s14, 1
      %s188 = smul.addr %s187, 8
      %s189 = scalar_lea.vmem %s3, %s188
      // Predicated region
      $region33: #{conv_bn_lrelu.3} parent=31 // pred_check
        %p190 = pneg %p100
      $region34: #{conv_bn_lrelu.3} parent=31 // pred_check_branch
        %192 = sbr.rel (%p190) target = $region36
      $region35: #{conv_bn_lrelu.3} parent=31 // pred_region
        _
      $region36: #{conv_bn_lrelu.3} parent=31 // pred_fallthru
        _
    $region32: #{conv_bn_lrelu.3} parent=5 // pred_fallthru
      _
    %p193 = scmp.le.s32.totalorder 2, %s9
    // Predicated region
    $region37: #{conv_bn_lrelu.3} parent=5 // pred_check
      %p194 = pneg %p193
    $region38: #{conv_bn_lrelu.3} parent=5 // pred_check_branch
      %196 = sbr.rel (%p194) target = $region40
    $region39: #{conv_bn_lrelu.3} parent=5 // pred_region
      %s197 = ssub.s32 %s9, 2
      // Predicated region
      $region41: #{conv_bn_lrelu.3} parent=39 // pred_check
        %p198 = pneg %p106
      $region42: #{conv_bn_lrelu.3} parent=39 // pred_check_branch
        %200 = sbr.rel (%p198) target = $region44
      $region43: #{conv_bn_lrelu.3} parent=39 // pred_region
        %p201 = scmp.lt.s32.totalorder %s15, 1
        %s202 = scalar_select %p201, %s15, 1
        %s203 = smul.addr %s202, 8
        %s204 = scalar_lea.vmem %s3, %s203
      $region44: #{conv_bn_lrelu.3} parent=39 // pred_fallthru
        _
    $region40: #{conv_bn_lrelu.3} parent=5 // pred_fallthru
      _
  $region6: #{conv_bn_lrelu.3} parent=0 // loop_footer
    %s13 = sadd.s32 1, %s9
  $region7: #{conv_bn_lrelu.3} parent=0 // loop_footer_branch
    %8 = sbr.rel target = $region3
  $region8: #{conv_bn_lrelu.3} parent=0 // loop_exit
    _

// kernel: conv_bn_lrelu.2
$region0: #{conv_bn_lrelu.2}
  #allocation0 [shape = 'u32[]', space=smem, size = 0x4, offset = 0x4, fixed_abs, tag = 'smem constant byte address 0x4 - core index']
  #allocation1 [shape = 'u32[144,128]{1,0:T(1,128)}', space=vmem, size = 0x12000, scoped, tag = 'internal scratch']
  %s0 = inlined_call_operand.vmem [shape: f32[9,8,4], index: 0, kind: input, shape index: {}]
  %s1 = inlined_call_operand.vmem [shape: f32[2,4,72], index: 1, kind: input, shape index: {}]
  %s2 = inlined_call_operand.vmem [shape: f32[2,4,72], index: 2, kind: input, shape index: {}]
  %s3 = inlined_call_operand.vmem [shape: f32[2,4,72], index: 3, kind: input, shape index: {}]
  %s4 = inlined_call_operand.vmem [shape: f32[2,4,64], index: 4, kind: input, shape index: {}]
  %s5 = inlined_call_operand.vmem [shape: f32[2,4,64], index: 5, kind: input, shape index: {}]
  %s6 = inlined_call_operand.vmem [shape: f32[2,4,64], index: 6, kind: input, shape index: {}]
  %s7 = inlined_call_operand.vmem [shape: f32[2,8,64], index: 7, kind: output, shape index: {0}]
  %s8 = inlined_call_operand.vmem [shape: f32[2,8,1], index: 8, kind: output, shape index: {1}]
  %s9 = inlined_call_operand.vmem [shape: f32[2,8,1], index: 9, kind: output, shape index: {2}]
  %10 = xla_tuple %s7, %s8, %s9
  %s11 = sld [smem:[#allocation0]]
  $region77: #{conv_bn_lrelu.2} parent=0
    _
  %s13 = ssub.s32 1, %s11
  %s14 = scalar_select 0, %s13, %s11
  loop: start=0, step=1, limit=4
  $region2: #{conv_bn_lrelu.2} parent=0 // loop_pre_header
    _
  $region3: #{conv_bn_lrelu.2} parent=0 // loop_header
    %s16 = sphi 0, %s20
    %p17 = scmp.ge.s32.totalorder %s16, 4
    %s24 = sphi 0, %s24
    %s26 = sphi 0, %s24
    %s27 = sphi 0, %s26
    %s41 = sphi 0, %s27
    %s47 = sphi 0, %s49
    %s50 = sphi 0, %s47
    %s51 = sphi 0, %s50
    %s67 = sphi 0, %s51
    %s73 = sphi 0, %s75
    %s76 = sphi 0, %s73
    %s77 = sphi 0, %s76
    %s93 = sphi 0, %s77
    %s99 = sphi 0, %s101
    %s102 = sphi 0, %s99
    %s103 = sphi 0, %s102
    %s119 = sphi 0, %s103
    %s125 = sphi 0, %s127
    %s128 = sphi 0, %s125
    %s129 = sphi 0, %s128
    %s145 = sphi 0, %s129
    %s151 = sphi 0, %s153
    %s154 = sphi 0, %s151
    %s155 = sphi 0, %s154
    %s171 = sphi 0, %s155
    %s177 = sphi 0, %s179
    %s180 = sphi 0, %s177
    %s181 = sphi 0, %s180
    %s197 = sphi 0, %s181
    %s203 = sphi 0, %s205
    %s206 = sphi 0, %s203
    %s207 = sphi 0, %s206
    %s223 = sphi 0, %s207
    %s229 = sphi 0, %s231
    %s232 = sphi 0, %s229
    %s233 = sphi 0, %s232
    %s249 = sphi 0, %s233
    %s255 = sphi 0, %s257
    %s258 = sphi 0, %s255
    %s259 = sphi 0, %s258
    %s275 = sphi 0, %s259
  $region4: #{conv_bn_lrelu.2} parent=0 // loop_header_branch
    %19 = sbr.rel (%p17) target = $region8
  $region5: #{conv_bn_lrelu.2} parent=0 // loop_body
    %s21 = ssub.s32 %s16, 1
    %s22 = ssub.s32 %s16, 2
    %s23 = sadd.s32 %s16, 1
    %s25 = sadd.s32 %s24, 1
    %p28 = scmp.eq.s32.totalorder %s16, 1
    %p29 = scmp.ne.s32.totalorder %s24, %s26
    %p30 = scmp.eq.s32.totalorder %s16, 0
    %p31 = por %p29, %p30
    %p32 = scmp.ne.s32.totalorder %s24, %s26
    %p33 = scmp.eq.s32.totalorder %s21, 1
    %p34 = por %p32, %p33
    %p35 = scmp.ne.s32.totalorder %s26, %s27
    %p36 = scmp.eq.s32.totalorder %s21, 0
    %p37 = por %p35, %p36
    %p38 = scmp.ne.s32.totalorder %s26, %s27
    %p39 = scmp.eq.s32.totalorder %s22, 1
    %p40 = por %p38, %p39
    %p42 = scmp.ne.s32.totalorder %s27, %s41
    %p43 = scmp.eq.s32.totalorder %s22, 0
    %p44 = por %p42, %p43
    %s45 = ssub.s32 %s16, %s23
    %p46 = scmp.eq.s32.totalorder %s45, 0
    %s48 = sadd.s32 %s47, 1
    %s49 = scalar_select %p46, %s47, %s48
    %p52 = pneg %p46
    %p53 = scmp.eq.s32.totalorder %s16, 1
    %p54 = por %p52, %p53
    %p55 = scmp.ne.s32.totalorder %s47, %s50
    %p56 = scmp.eq.s32.totalorder %s16, 0
    %p57 = por %p55, %p56
    %p58 = scmp.ne.s32.totalorder %s47, %s50
    %p59 = scmp.eq.s32.totalorder %s21, 1
    %p60 = por %p58, %p59
    %p61 = scmp.ne.s32.totalorder %s50, %s51
    %p62 = scmp.eq.s32.totalorder %s21, 0
    %p63 = por %p61, %p62
    %p64 = scmp.ne.s32.totalorder %s50, %s51
    %p65 = scmp.eq.s32.totalorder %s22, 1
    %p66 = por %p64, %p65
    %p68 = scmp.ne.s32.totalorder %s51, %s67
    %p69 = scmp.eq.s32.totalorder %s22, 0
    %p70 = por %p68, %p69
    %s71 = ssub.s32 %s16, %s23
    %p72 = scmp.eq.s32.totalorder %s71, 0
    %s74 = sadd.s32 %s73, 1
    %s75 = scalar_select %p72, %s73, %s74
    %p78 = pneg %p72
    %p79 = scmp.eq.s32.totalorder %s16, 1
    %p80 = por %p78, %p79
    %p81 = scmp.ne.s32.totalorder %s73, %s76
    %p82 = scmp.eq.s32.totalorder %s16, 0
    %p83 = por %p81, %p82
    %p84 = scmp.ne.s32.totalorder %s73, %s76
    %p85 = scmp.eq.s32.totalorder %s21, 1
    %p86 = por %p84, %p85
    %p87 = scmp.ne.s32.totalorder %s76, %s77
    %p88 = scmp.eq.s32.totalorder %s21, 0
    %p89 = por %p87, %p88
    %p90 = scmp.ne.s32.totalorder %s76, %s77
    %p91 = scmp.eq.s32.totalorder %s22, 1
    %p92 = por %p90, %p91
    %p94 = scmp.ne.s32.totalorder %s77, %s93
    %p95 = scmp.eq.s32.totalorder %s22, 0
    %p96 = por %p94, %p95
    %s97 = ssub.s32 %s16, %s23
    %p98 = scmp.eq.s32.totalorder %s97, 0
    %s100 = sadd.s32 %s99, 1
    %s101 = scalar_select %p98, %s99, %s100
    %p104 = pneg %p98
    %p105 = scmp.eq.s32.totalorder %s16, 1
    %p106 = por %p104, %p105
    %p107 = scmp.ne.s32.totalorder %s99, %s102
    %p108 = scmp.eq.s32.totalorder %s16, 0
    %p109 = por %p107, %p108
    %p110 = scmp.ne.s32.totalorder %s99, %s102
    %p111 = scmp.eq.s32.totalorder %s21, 1
    %p112 = por %p110, %p111
    %p113 = scmp.ne.s32.totalorder %s102, %s103
    %p114 = scmp.eq.s32.totalorder %s21, 0
    %p115 = por %p113, %p114
    %p116 = scmp.ne.s32.totalorder %s102, %s103
    %p117 = scmp.eq.s32.totalorder %s22, 1
    %p118 = por %p116, %p117
    %p120 = scmp.ne.s32.totalorder %s103, %s119
    %p121 = scmp.eq.s32.totalorder %s22, 0
    %p122 = por %p120, %p121
    %s123 = ssub.s32 %s16, %s23
    %p124 = scmp.eq.s32.totalorder %s123, 0
    %s126 = sadd.s32 %s125, 1
    %s127 = scalar_select %p124, %s125, %s126
    %p130 = pneg %p124
    %p131 = scmp.eq.s32.totalorder %s16, 1
    %p132 = por %p130, %p131
    %p133 = scmp.ne.s32.totalorder %s125, %s128
    %p134 = scmp.eq.s32.totalorder %s16, 0
    %p135 = por %p133, %p134
    %p136 = scmp.ne.s32.totalorder %s125, %s128
    %p137 = scmp.eq.s32.totalorder %s21, 1
    %p138 = por %p136, %p137
    %p139 = scmp.ne.s32.totalorder %s128, %s129
    %p140 = scmp.eq.s32.totalorder %s21, 0
    %p141 = por %p139, %p140
    %p142 = scmp.ne.s32.totalorder %s128, %s129
    %p143 = scmp.eq.s32.totalorder %s22, 1
    %p144 = por %p142, %p143
    %p146 = scmp.ne.s32.totalorder %s129, %s145
    %p147 = scmp.eq.s32.totalorder %s22, 0
    %p148 = por %p146, %p147
    %s149 = ssub.s32 %s16, %s23
    %p150 = scmp.eq.s32.totalorder %s149, 0
    %s152 = sadd.s32 %s151, 1
    %s153 = scalar_select %p150, %s151, %s152
    %p156 = pneg %p150
    %p157 = scmp.eq.s32.totalorder %s16, 1
    %p158 = por %p156, %p157
    %p159 = scmp.ne.s32.totalorder %s151, %s154
    %p160 = scmp.eq.s32.totalorder %s16, 0
    %p161 = por %p159, %p160
    %p162 = scmp.ne.s32.totalorder %s151, %s154
    %p163 = scmp.eq.s32.totalorder %s21, 1
    %p164 = por %p162, %p163
    %p165 = scmp.ne.s32.totalorder %s154, %s155
    %p166 = scmp.eq.s32.totalorder %s21, 0
    %p167 = por %p165, %p166
    %p168 = scmp.ne.s32.totalorder %s154, %s155
    %p169 = scmp.eq.s32.totalorder %s22, 1
    %p170 = por %p168, %p169
    %p172 = scmp.ne.s32.totalorder %s155, %s171
    %p173 = scmp.eq.s32.totalorder %s22, 0
    %p174 = por %p172, %p173
    %s175 = ssub.s32 %s16, %s23
    %p176 = scmp.eq.s32.totalorder %s175, 0
    %s178 = sadd.s32 %s177, 1
    %s179 = scalar_select %p176, %s177, %s178
    %p182 = pneg %p176
    %p183 = scmp.eq.s32.totalorder %s16, 1
    %p184 = por %p182, %p183
    %p185 = scmp.ne.s32.totalorder %s177, %s180
    %p186 = scmp.eq.s32.totalorder %s16, 0
    %p187 = por %p185, %p186
    %p188 = scmp.ne.s32.totalorder %s177, %s180
    %p189 = scmp.eq.s32.totalorder %s21, 1
    %p190 = por %p188, %p189
    %p191 = scmp.ne.s32.totalorder %s180, %s181
    %p192 = scmp.eq.s32.totalorder %s21, 0
    %p193 = por %p191, %p192
    %p194 = scmp.ne.s32.totalorder %s180, %s181
    %p195 = scmp.eq.s32.totalorder %s22, 1
    %p196 = por %p194, %p195
    %p198 = scmp.ne.s32.totalorder %s181, %s197
    %p199 = scmp.eq.s32.totalorder %s22, 0
    %p200 = por %p198, %p199
    %s201 = ssub.s32 %s16, %s23
    %p202 = scmp.eq.s32.totalorder %s201, 0
    %s204 = sadd.s32 %s203, 1
    %s205 = scalar_select %p202, %s203, %s204
    %p208 = pneg %p202
    %p209 = scmp.eq.s32.totalorder %s16, 1
    %p210 = por %p208, %p209
    %p211 = scmp.ne.s32.totalorder %s203, %s206
    %p212 = scmp.eq.s32.totalorder %s16, 0
    %p213 = por %p211, %p212
    %p214 = scmp.ne.s32.totalorder %s203, %s206
    %p215 = scmp.eq.s32.totalorder %s21, 1
    %p216 = por %p214, %p215
    %p217 = scmp.ne.s32.totalorder %s206, %s207
    %p218 = scmp.eq.s32.totalorder %s21, 0
    %p219 = por %p217, %p218
    %p220 = scmp.ne.s32.totalorder %s206, %s207
    %p221 = scmp.eq.s32.totalorder %s22, 1
    %p222 = por %p220, %p221
    %p224 = scmp.ne.s32.totalorder %s207, %s223
    %p225 = scmp.eq.s32.totalorder %s22, 0
    %p226 = por %p224, %p225
    %s227 = ssub.s32 %s16, %s23
    %p228 = scmp.eq.s32.totalorder %s227, 0
    %s230 = sadd.s32 %s229, 1
    %s231 = scalar_select %p228, %s229, %s230
    %p234 = pneg %p228
    %p235 = scmp.eq.s32.totalorder %s16, 1
    %p236 = por %p234, %p235
    %p237 = scmp.ne.s32.totalorder %s229, %s232
    %p238 = scmp.eq.s32.totalorder %s16, 0
    %p239 = por %p237, %p238
    %p240 = scmp.ne.s32.totalorder %s229, %s232
    %p241 = scmp.eq.s32.totalorder %s21, 1
    %p242 = por %p240, %p241
    %p243 = scmp.ne.s32.totalorder %s232, %s233
    %p244 = scmp.eq.s32.totalorder %s21, 0
    %p245 = por %p243, %p244
    %p246 = scmp.ne.s32.totalorder %s232, %s233
    %p247 = scmp.eq.s32.totalorder %s22, 1
    %p248 = por %p246, %p247
    %p250 = scmp.ne.s32.totalorder %s233, %s249
    %p251 = scmp.eq.s32.totalorder %s22, 0
    %p252 = por %p250, %p251
    %s253 = ssub.s32 %s16, %s23
    %p254 = scmp.eq.s32.totalorder %s253, 0
    %s256 = sadd.s32 %s255, 1
    %s257 = scalar_select %p254, %s255, %s256
    %p260 = pneg %p254
    %p261 = scmp.eq.s32.totalorder %s16, 1
    %p262 = por %p260, %p261
    %p263 = scmp.ne.s32.totalorder %s255, %s258
    %p264 = scmp.eq.s32.totalorder %s16, 0
    %p265 = por %p263, %p264
    %p266 = scmp.ne.s32.totalorder %s255, %s258
    %p267 = scmp.eq.s32.totalorder %s21, 1
    %p268 = por %p266, %p267
    %p269 = scmp.ne.s32.totalorder %s258, %s259
    %p270 = scmp.eq.s32.totalorder %s21, 0
    %p271 = por %p269, %p270
    %p272 = scmp.ne.s32.totalorder %s258, %s259
    %p273 = scmp.eq.s32.totalorder %s22, 1
    %p274 = por %p272, %p273
    %p276 = scmp.ne.s32.totalorder %s259, %s275
    %p277 = scmp.eq.s32.totalorder %s22, 0
    %p278 = por %p276, %p277
    %p279 = scmp.le.s32.totalorder 1, %s16
    %p280 = scmp.lt.s32.totalorder %s16, 3
    %p281 = pnand %p279, %p280
    %p282 = pneg %p281
    // Predicated region
    $region9: #{conv_bn_lrelu.2} parent=5 // pred_check
      _
    $region10: #{conv_bn_lrelu.2} parent=5 // pred_check_branch
      %284 = sbr.rel (%p281) target = $region12
    $region11: #{conv_bn_lrelu.2} parent=5 // pred_region
      %s285 = ssub.s32 %s16, 1
      // Predicated region
      $region13: #{conv_bn_lrelu.2} parent=11 // pred_check
        %p286 = pneg %p37
      $region14: #{conv_bn_lrelu.2} parent=11 // pred_check_branch
        %288 = sbr.rel (%p286) target = $region16
      $region15: #{conv_bn_lrelu.2} parent=11 // pred_region
        _
      $region16: #{conv_bn_lrelu.2} parent=11 // pred_fallthru
        _
    $region12: #{conv_bn_lrelu.2} parent=5 // pred_fallthru
      _
    %p289 = scmp.lt.s32.totalorder %s16, 2
    // Predicated region
    $region17: #{conv_bn_lrelu.2} parent=5 // pred_check
      %p290 = pneg %p289
    $region18: #{conv_bn_lrelu.2} parent=5 // pred_check_branch
      %292 = sbr.rel (%p290) target = $region20
    $region19: #{conv_bn_lrelu.2} parent=5 // pred_region
      // Predicated region
      $region21: #{conv_bn_lrelu.2} parent=19 // pred_check
        %p293 = pneg %p57
      $region22: #{conv_bn_lrelu.2} parent=19 // pred_check_branch
        %295 = sbr.rel (%p293) target = $region24
      $region23: #{conv_bn_lrelu.2} parent=19 // pred_region
        %p296 = scmp.lt.s32.totalorder %s16, 1
        %s297 = scalar_select %p296, %s16, 1
        %s298 = smul.addr %s297, 4
        %s299 = scalar_lea.vmem %s1, %s298
      $region24: #{conv_bn_lrelu.2} parent=19 // pred_fallthru
        _
      // Predicated region
      $region25: #{conv_bn_lrelu.2} parent=19 // pred_check
        %p300 = pneg %p83
      $region26: #{conv_bn_lrelu.2} parent=19 // pred_check_branch
        %302 = sbr.rel (%p300) target = $region28
      $region27: #{conv_bn_lrelu.2} parent=19 // pred_region
        %p303 = scmp.lt.s32.totalorder %s16, 1
        %s304 = scalar_select %p303, %s16, 1
        %s305 = smul.addr %s304, 4
        %s306 = scalar_lea.vmem %s2, %s305
      $region28: #{conv_bn_lrelu.2} parent=19 // pred_fallthru
        _
      // Predicated region
      $region29: #{conv_bn_lrelu.2} parent=19 // pred_check
        %p307 = pneg %p109
      $region30: #{conv_bn_lrelu.2} parent=19 // pred_check_branch
        %309 = sbr.rel (%p307) target = $region32
      $region31: #{conv_bn_lrelu.2} parent=19 // pred_region
        %p310 = scmp.lt.s32.totalorder %s16, 1
        %s311 = scalar_select %p310, %s16, 1
        %s312 = smul.addr %s311, 4
        %s313 = scalar_lea.vmem %s3, %s312
      $region32: #{conv_bn_lrelu.2} parent=19 // pred_fallthru
        _
      // Predicated region
      $region33: #{conv_bn_lrelu.2} parent=19 // pred_check
        %p314 = pneg %p135
      $region34: #{conv_bn_lrelu.2} parent=19 // pred_check_branch
        %316 = sbr.rel (%p314) target = $region36
      $region35: #{conv_bn_lrelu.2} parent=19 // pred_region
        %p317 = scmp.lt.s32.totalorder %s16, 1
        %s318 = scalar_select %p317, %s16, 1
        %s319 = smul.addr %s318, 4
        %s320 = scalar_lea.vmem %s4, %s319
      $region36: #{conv_bn_lrelu.2} parent=19 // pred_fallthru
        _
      // Predicated region
      $region37: #{conv_bn_lrelu.2} parent=19 // pred_check
        %p321 = pneg %p161
      $region38: #{conv_bn_lrelu.2} parent=19 // pred_check_branch
        %323 = sbr.rel (%p321) target = $region40
      $region39: #{conv_bn_lrelu.2} parent=19 // pred_region
        %p324 = scmp.lt.s32.totalorder %s16, 1
        %s325 = scalar_select %p324, %s16, 1
        %s326 = smul.addr %s325, 4
        %s327 = scalar_lea.vmem %s5, %s326
      $region40: #{conv_bn_lrelu.2} parent=19 // pred_fallthru
        _
      // Predicated region
      $region41: #{conv_bn_lrelu.2} parent=19 // pred_check
        %p328 = pneg %p187
      $region42: #{conv_bn_lrelu.2} parent=19 // pred_check_branch
        %330 = sbr.rel (%p328) target = $region44
      $region43: #{conv_bn_lrelu.2} parent=19 // pred_region
        %p331 = scmp.lt.s32.totalorder %s16, 1
        %s332 = scalar_select %p331, %s16, 1
        %s333 = smul.addr %s332, 4
        %s334 = scalar_lea.vmem %s6, %s333
      $region44: #{conv_bn_lrelu.2} parent=19 // pred_fallthru
        _
    $region20: #{conv_bn_lrelu.2} parent=5 // pred_fallthru
      _
    %p335 = scmp.le.s32.totalorder 1, %s16
    %p336 = scmp.lt.s32.totalorder %s16, 3
    %p337 = pnand %p335, %p336
    %p338 = pneg %p337
    // Predicated region
    $region45: #{conv_bn_lrelu.2} parent=5 // pred_check
      _
    $region46: #{conv_bn_lrelu.2} parent=5 // pred_check_branch
      %340 = sbr.rel (%p337) target = $region48
    $region47: #{conv_bn_lrelu.2} parent=5 // pred_region
      %s341 = ssub.s32 %s16, 1
      %p342 = pneg %p37
      %p343 = pneg %p34
      %p344 = scmp.lt.s32.totalorder %s21, 1
      %s345 = scalar_select %p344, %s21, 1
      %s346 = smul.addr %s345, 4
      %s347 = scalar_lea.vmem %s1, %s346
      %p348 = pneg %p63
      %p349 = pneg %p60
      %p350 = scmp.lt.s32.totalorder %s21, 1
      %s351 = scalar_select %p350, %s21, 1
      %s352 = smul.addr %s351, 4
      %s353 = scalar_lea.vmem %s2, %s352
      %p354 = pneg %p89
      %p355 = pneg %p86
      %p356 = scmp.lt.s32.totalorder %s21, 1
      %s357 = scalar_select %p356, %s21, 1
      %s358 = smul.addr %s357, 4
      %s359 = scalar_lea.vmem %s3, %s358
      %p360 = pneg %p115
      %p361 = pneg %p112
      %p362 = scmp.lt.s32.totalorder %s21, 1
      %s363 = scalar_select %p362, %s21, 1
      %s364 = smul.addr %s363, 4
      %s365 = scalar_lea.vmem %s4, %s364
      %p366 = pneg %p141
      %p367 = pneg %p138
      %p368 = scmp.lt.s32.totalorder %s21, 1
      %s369 = scalar_select %p368, %s21, 1
      %s370 = smul.addr %s369, 4
      %s371 = scalar_lea.vmem %s5, %s370
      %p372 = pneg %p167
      %p373 = pneg %p164
      %p374 = scmp.lt.s32.totalorder %s21, 1
      %s375 = scalar_select %p374, %s21, 1
      %s376 = smul.addr %s375, 4
      %s377 = scalar_lea.vmem %s6, %s376
      %p378 = pneg %p193
      %p379 = pneg %p190
      %p380 = pneg %p219
      %p381 = pneg %p216
      %p382 = scmp.lt.s32.totalorder %s21, 1
      %s383 = scalar_select %p382, %s21, 1
      %s384 = smul.addr %s383, 8
      %s385 = scalar_lea.vmem %s7, %s384
      %p386 = pneg %p245
      %p387 = pneg %p242
      %p388 = scmp.lt.s32.totalorder %s21, 1
      %s389 = scalar_select %p388, %s21, 1
      %s390 = smul.addr %s389, 8
      %s391 = scalar_lea.vmem %s8, %s390
      %p392 = pneg %p271
      %p393 = pneg %p268
      %p394 = scmp.lt.s32.totalorder %s21, 1
      %s395 = scalar_select %p394, %s21, 1
      %s396 = smul.addr %s395, 8
      %s397 = scalar_lea.vmem %s9, %s396
      %p398 = scmp.lt.s32.totalorder %s21, 1
      %s399 = scalar_select %p398, %s21, 1
      %s400 = smul.addr %s399, 4
      %s401 = scalar_lea.vmem %s1, %s400
      %p402 = scmp.lt.s32.totalorder %s21, 1
      %s403 = scalar_select %p402, %s21, 1
      %s404 = smul.addr %s403, 4
      %s405 = scalar_lea.vmem %s2, %s404
      %p406 = scmp.lt.s32.totalorder %s21, 1
      %s407 = scalar_select %p406, %s21, 1
      %s408 = smul.addr %s407, 4
      %s409 = scalar_lea.vmem %s3, %s408
      %p410 = scmp.lt.s32.totalorder %s21, 1
      %s411 = scalar_select %p410, %s21, 1
      %s412 = smul.addr %s411, 4
      %s413 = scalar_lea.vmem %s4, %s412
      %p414 = scmp.lt.s32.totalorder %s21, 1
      %s415 = scalar_select %p414, %s21, 1
      %s416 = smul.addr %s415, 4
      %s417 = scalar_lea.vmem %s5, %s416
      %p418 = scmp.lt.s32.totalorder %s21, 1
      %s419 = scalar_select %p418, %s21, 1
      %s420 = smul.addr %s419, 4
      %s421 = scalar_lea.vmem %s6, %s420
      %p422 = scmp.lt.s32.totalorder %s21, 1
      %s423 = scalar_select %p422, %s21, 1
      %s424 = smul.addr %s423, 8
      %s425 = scalar_lea.vmem %s7, %s424
      %p426 = scmp.lt.s32.totalorder %s21, 1
      %s427 = scalar_select %p426, %s21, 1
      %s428 = smul.addr %s427, 8
      %s429 = scalar_lea.vmem %s8, %s428
      %p430 = scmp.lt.s32.totalorder %s21, 1
      %s431 = scalar_select %p430, %s21, 1
      %s432 = smul.addr %s431, 8
      %s433 = scalar_lea.vmem %s9, %s432
      %v434 = vld [vmem:[%s401] sm:$0xf]
      %v435 = vld [vmem:[%s413] sm:$0xf]
      %v436 = vld [vmem:[%s0] sm:$0xff]
      %s437 = scalar_lea.vmem %s0, 24
      %v438 = vld [vmem:[%s437] sm:$0xff]
      %vm439 = vcmask 31744
      %v441 = vsel %vm439, %v438, 0
      %vm443 = vcmask 1043456
      %v445 = vsel %vm443, %v435, 0
      %447 = vmatprep.subr.mxu0 0.0
      %448 = vmatpush1.msra.mxu0 %v445
      %449 = vmatprep.subr.mxu0 0.0
      %450 = vmatpush1.msra.mxu0 0.0
      %451 = vmatprep.subr.mxu0 0.0
      %452 = vmatpush1.msra.mxu0 0.0
      %453 = vmatprep.subr.mxu0 0.0
      %454 = vmatpush1.msra.mxu0 0.0
      %455 = vmatprep.subr.mxu0 0.0
      %456 = vmatpush1.msra.mxu0 0.0
      %457 = vmatprep.subr.mxu0 0.0
      %458 = vmatpush1.msra.mxu0 0.0
      %459 = vmatprep.subr.mxu0 0.0
      %460 = vmatpush1.msra.mxu0 0.0
      %461 = vmatprep.subr.mxu0 0.0
      %462 = vmatpush1.msra.mxu0 0.0
      %463 = vmatprep.subr.mxu0 0.0
      %464 = vmatpush1.msra.mxu0 0.0
      %465 = vmatprep.subr.mxu0 0.0
      %466 = vmatpush1.msra.mxu0 0.0
      %467 = vmatprep.subr.mxu0 0.0
      %468 = vmatpush1.msra.mxu0 0.0
      %469 = vmatprep.subr.mxu0 0.0
      %470 = vmatpush1.msra.mxu0 0.0
      %471 = vmatprep.subr.mxu0 0.0
      %472 = vmatpush1.msra.mxu0 0.0
      %473 = vmatprep.subr.mxu0 0.0
      %474 = vmatpush1.msra.mxu0 0.0
      %475 = vmatprep.subr.mxu0 0.0
      %476 = vmatpush1.msra.mxu0 0.0
      %477 = vmatprep.subr.mxu0 0.0
      %478 = vmatpush1.msra.mxu0 0.0
      %479 = vmatprep.subr.mxu0 0.0
      %480 = vmatpush1.msra.mxu0 0.0
      %481 = vmatprep.subr.mxu0 0.0
      %482 = vmatpush1.msra.mxu0 0.0
      %483 = vmatprep.subr.mxu0 0.0
      %484 = vmatpush1.msra.mxu0 0.0
      %485 = vmatprep.subr.mxu0 0.0
      %486 = vmatpush1.msra.mxu0 0.0
      %487 = vmatprep.subr.mxu0 0.0
      %488 = vmatpush1.msra.mxu0 0.0
      %489 = vmatprep.subr.mxu0 0.0
      %490 = vmatpush1.msra.mxu0 0.0
      %491 = vmatprep.subr.mxu0 0.0
      %492 = vmatpush1.msra.mxu0 0.0
      %493 = vmatprep.subr.mxu0 0.0
      %494 = vmatpush1.msra.mxu0 0.0
      %495 = vmatprep.subr.mxu0 0.0
      %496 = vmatpush1.msra.mxu0 0.0
      %497 = vmatprep.subr.mxu0 0.0
      %498 = vmatpush1.msra.mxu0 0.0
      %499 = vmatprep.subr.mxu0 0.0
      %500 = vmatpush1.msra.mxu0 0.0
      %501 = vmatprep.subr.mxu0 0.0
      %502 = vmatpush1.msra.mxu0 0.0
      %503 = vmatprep.subr.mxu0 0.0
      %504 = vmatpush1.msra.mxu0 0.0
      %505 = vmatprep.subr.mxu0 0.0
      %506 = vmatpush1.msra.mxu0 0.0
      %507 = vmatprep.subr.mxu0 0.0
      %508 = vmatpush1.msra.mxu0 0.0
      %509 = vmatprep.subr.mxu0 0.0
      %510 = vmatpush1.msra.mxu0 0.0
      %511 = vmatprep.mubr.f32.mxu0 0.0
      %512 = vmatmul.mubr.f32.gmra.mrb[0].mxu0 %v441
      %v513 = vpop.f32.mrb[0].mxu0
      %v514 = vadd.f32 0.0, %v513
      %v515 = vpop.f32.mrb[0].mxu0
      %516 = vdwg.mxu0
      %v518 = vsel %vm439, %v436, 0
      %v521 = vsel %vm443, %v434, 0
      %523 = vmatprep.subr.mxu0 0.0
      %524 = vmatpush1.msra.mxu0 %v521
      %525 = vmatprep.subr.mxu0 0.0
      %526 = vmatpush1.msra.mxu0 0.0
      %527 = vmatprep.subr.mxu0 0.0
      %528 = vmatpush1.msra.mxu0 0.0
      %529 = vmatprep.subr.mxu0 0.0
      %530 = vmatpush1.msra.mxu0 0.0
      %531 = vmatprep.subr.mxu0 0.0
      %532 = vmatpush1.msra.mxu0 0.0
      %533 = vmatprep.subr.mxu0 0.0
      %534 = vmatpush1.msra.mxu0 0.0
      %535 = vmatprep.subr.mxu0 0.0
      %536 = vmatpush1.msra.mxu0 0.0
      %537 = vmatprep.subr.mxu0 0.0
      %538 = vmatpush1.msra.mxu0 0.0
      %539 = vmatprep.subr.mxu0 0.0
      %540 = vmatpush1.msra.mxu0 0.0
      %541 = vmatprep.subr.mxu0 0.0
      %542 = vmatpush1.msra.mxu0 0.0
      %543 = vmatprep.subr.mxu0 0.0
      %544 = vmatpush1.msra.mxu0 0.0
      %545 = vmatprep.subr.mxu0 0.0
      %546 = vmatpush1.msra.mxu0 0.0
      %547 = vmatprep.subr.mxu0 0.0
      %548 = vmatpush1.msra.mxu0 0.0
      %549 = vmatprep.subr.mxu0 0.0
      %550 = vmatpush1.msra.mxu0 0.0
      %551 = vmatprep.subr.mxu0 0.0
      %552 = vmatpush1.msra.mxu0 0.0
      %553 = vmatprep.subr.mxu0 0.0
      %554 = vmatpush1.msra.mxu0 0.0
      %555 = vmatprep.subr.mxu0 0.0
      %556 = vmatpush1.msra.mxu0 0.0
      %557 = vmatprep.subr.mxu0 0.0
      %558 = vmatpush1.msra.mxu0 0.0
      %559 = vmatprep.subr.mxu0 0.0
      %560 = vmatpush1.msra.mxu0 0.0
      %561 = vmatprep.subr.mxu0 0.0
      %562 = vmatpush1.msra.mxu0 0.0
      %563 = vmatprep.subr.mxu0 0.0
      %564 = vmatpush1.msra.mxu0 0.0
      %565 = vmatprep.subr.mxu0 0.0
      %566 = vmatpush1.msra.mxu0 0.0
      %567 = vmatprep.subr.mxu0 0.0
      %568 = vmatpush1.msra.mxu0 0.0
      %569 = vmatprep.subr.mxu0 0.0
      %570 = vmatpush1.msra.mxu0 0.0
      %571 = vmatprep.subr.mxu0 0.0
      %572 = vmatpush1.msra.mxu0 0.0
      %573 = vmatprep.subr.mxu0 0.0
      %574 = vmatpush1.msra.mxu0 0.0
      %575 = vmatprep.subr.mxu0 0.0
      %576 = vmatpush1.msra.mxu0 0.0
      %577 = vmatprep.subr.mxu0 0.0
      %578 = vmatpush1.msra.mxu0 0.0
      %579 = vmatprep.subr.mxu0 0.0
      %580 = vmatpush1.msra.mxu0 0.0
      %581 = vmatprep.subr.mxu0 0.0
      %582 = vmatpush1.msra.mxu0 0.0
      %583 = vmatprep.subr.mxu0 0.0
      %584 = vmatpush1.msra.mxu0 0.0
      %585 = vmatprep.subr.mxu0 0.0
      %586 = vmatpush1.msra.mxu0 0.0
      %587 = vmatprep.mubr.f32.mxu0 0.0
      %588 = vmatmul.mubr.f32.gmra.mrb[0].mxu0 %v518
      %v589 = vpop.f32.mrb[0].mxu0
      %v590 = vadd.f32 %v514, %v589
      %v591 = vpop.f32.mrb[0].mxu0
      %592 = vdwg.mxu0
      %s593 = scalar_lea.vmem %s0, 48
      %v594 = vld [vmem:[%s593] sm:$0xff]
      %595 = vrot.lane.b32.xlu0 %v434, 120
      %v596 = vpop.permute.xlu0 %595
      %v598 = vsel %vm439, %v594, 0
      %v600 = vsel %vm443, %v596, 0
      %602 = vmatprep.subr.mxu0 0.0
      %603 = vmatpush1.msra.mxu0 %v600
      %604 = vmatprep.subr.mxu0 0.0
      %605 = vmatpush1.msra.mxu0 0.0
      %606 = vmatprep.subr.mxu0 0.0
      %607 = vmatpush1.msra.mxu0 0.0
      %608 = vmatprep.subr.mxu0 0.0
      %609 = vmatpush1.msra.mxu0 0.0
      %610 = vmatprep.subr.mxu0 0.0
      %611 = vmatpush1.msra.mxu0 0.0
      %612 = vmatprep.subr.mxu0 0.0
      %613 = vmatpush1.msra.mxu0 0.0
      %614 = vmatprep.subr.mxu0 0.0
      %615 = vmatpush1.msra.mxu0 0.0
      %616 = vmatprep.subr.mxu0 0.0
      %617 = vmatpush1.msra.mxu0 0.0
      %618 = vmatprep.subr.mxu0 0.0
      %619 = vmatpush1.msra.mxu0 0.0
      %620 = vmatprep.subr.mxu0 0.0
      %621 = vmatpush1.msra.mxu0 0.0
      %622 = vmatprep.subr.mxu0 0.0
      %623 = vmatpush1.msra.mxu0 0.0
      %624 = vmatprep.subr.mxu0 0.0
      %625 = vmatpush1.msra.mxu0 0.0
      %626 = vmatprep.subr.mxu0 0.0
      %627 = vmatpush1.msra.mxu0 0.0
      %628 = vmatprep.subr.mxu0 0.0
      %629 = vmatpush1.msra.mxu0 0.0
      %630 = vmatprep.subr.mxu0 0.0
      %631 = vmatpush1.msra.mxu0 0.0
      %632 = vmatprep.subr.mxu0 0.0
      %633 = vmatpush1.msra.mxu0 0.0
      %634 = vmatprep.subr.mxu0 0.0
      %635 = vmatpush1.msra.mxu0 0.0
      %636 = vmatprep.subr.mxu0 0.0
      %637 = vmatpush1.msra.mxu0 0.0
      %638 = vmatprep.subr.mxu0 0.0
      %639 = vmatpush1.msra.mxu0 0.0
      %640 = vmatprep.subr.mxu0 0.0
      %641 = vmatpush1.msra.mxu0 0.0
      %642 = vmatprep.subr.mxu0 0.0
      %643 = vmatpush1.msra.mxu0 0.0
      %644 = vmatprep.subr.mxu0 0.0
      %645 = vmatpush1.msra.mxu0 0.0
      %646 = vmatprep.subr.mxu0 0.0
      %647 = vmatpush1.msra.mxu0 0.0
      %648 = vmatprep.subr.mxu0 0.0
      %649 = vmatpush1.msra.mxu0 0.0
      %650 = vmatprep.subr.mxu0 0.0
      %651 = vmatpush1.msra.mxu0 0.0
      %652 = vmatprep.subr.mxu0 0.0
      %653 = vmatpush1.msra.mxu0 0.0
      %654 = vmatprep.subr.mxu0 0.0
      %655 = vmatpush1.msra.mxu0 0.0
      %656 = vmatprep.subr.mxu0 0.0
      %657 = vmatpush1.msra.mxu0 0.0
      %658 = vmatprep.subr.mxu0 0.0
      %659 = vmatpush1.msra.mxu0 0.0
      %660 = vmatprep.subr.mxu0 0.0
      %661 = vmatpush1.msra.mxu0 0.0
      %662 = vmatprep.subr.mxu0 0.0
      %663 = vmatpush1.msra.mxu0 0.0
      %664 = vmatprep.subr.mxu0 0.0
      %665 = vmatpush1.msra.mxu0 0.0
      %666 = vmatprep.mubr.f32.mxu0 0.0
      %667 = vmatmul.mubr.f32.gmra.mrb[0].mxu0 %v598
      %v668 = vpop.f32.mrb[0].mxu0
      %v669 = vadd.f32 0.0, %v668
      %v670 = vpop.f32.mrb[0].mxu0
      %671 = vdwg.mxu0
      %v672 = vadd.f32 %v590, %v669
      %v673 = vld [vmem:[%s405] sm:$0xf]
      %v674 = vld [vmem:[%s417] sm:$0xf]
      %s675 = scalar_lea.vmem %s0, 8
      %v676 = vld [vmem:[%s675] sm:$0xff]
      %v678 = vsel %vm439, %v676, 0
      %v681 = vsel %vm443, %v673, 0
      %683 = vmatprep.subr.mxu0 0.0
      %684 = vmatpush1.msra.mxu0 %v681
      %685 = vmatprep.subr.mxu0 0.0
      %686 = vmatpush1.msra.mxu0 0.0
      %687 = vmatprep.subr.mxu0 0.0
      %688 = vmatpush1.msra.mxu0 0.0
      %689 = vmatprep.subr.mxu0 0.0
      %690 = vmatpush1.msra.mxu0 0.0
      %691 = vmatprep.subr.mxu0 0.0
      %692 = vmatpush1.msra.mxu0 0.0
      %693 = vmatprep.subr.mxu0 0.0
      %694 = vmatpush1.msra.mxu0 0.0
      %695 = vmatprep.subr.mxu0 0.0
      %696 = vmatpush1.msra.mxu0 0.0
      %697 = vmatprep.subr.mxu0 0.0
      %698 = vmatpush1.msra.mxu0 0.0
      %699 = vmatprep.subr.mxu0 0.0
      %700 = vmatpush1.msra.mxu0 0.0
      %701 = vmatprep.subr.mxu0 0.0
      %702 = vmatpush1.msra.mxu0 0.0
      %703 = vmatprep.subr.mxu0 0.0
      %704 = vmatpush1.msra.mxu0 0.0
      %705 = vmatprep.subr.mxu0 0.0
      %706 = vmatpush1.msra.mxu0 0.0
      %707 = vmatprep.subr.mxu0 0.0
      %708 = vmatpush1.msra.mxu0 0.0
      %709 = vmatprep.subr.mxu0 0.0
      %710 = vmatpush1.msra.mxu0 0.0
      %711 = vmatprep.subr.mxu0 0.0
      %712 = vmatpush1.msra.mxu0 0.0
      %713 = vmatprep.subr.mxu0 0.0
      %714 = vmatpush1.msra.mxu0 0.0
      %715 = vmatprep.subr.mxu0 0.0
      %716 = vmatpush1.msra.mxu0 0.0
      %717 = vmatprep.subr.mxu0 0.0
      %718 = vmatpush1.msra.mxu0 0.0
      %719 = vmatprep.subr.mxu0 0.0
      %720 = vmatpush1.msra.mxu0 0.0
      %721 = vmatprep.subr.mxu0 0.0
      %722 = vmatpush1.msra.mxu0 0.0
      %723 = vmatprep.subr.mxu0 0.0
      %724 = vmatpush1.msra.mxu0 0.0
      %725 = vmatprep.subr.mxu0 0.0
      %726 = vmatpush1.msra.mxu0 0.0
      %727 = vmatprep.subr.mxu0 0.0
      %728 = vmatpush1.msra.mxu0 0.0
      %729 = vmatprep.subr.mxu0 0.0
      %730 = vmatpush1.msra.mxu0 0.0
      %731 = vmatprep.subr.mxu0 0.0
      %732 = vmatpush1.msra.mxu0 0.0
      %733 = vmatprep.subr.mxu0 0.0
      %734 = vmatpush1.msra.mxu0 0.0
      %735 = vmatprep.subr.mxu0 0.0
      %736 = vmatpush1.msra.mxu0 0.0
      %737 = vmatprep.subr.mxu0 0.0
      %738 = vmatpush1.msra.mxu0 0.0
      %739 = vmatprep.subr.mxu0 0.0
      %740 = vmatpush1.msra.mxu0 0.0
      %741 = vmatprep.subr.mxu0 0.0
      %742 = vmatpush1.msra.mxu0 0.0
      %743 = vmatprep.subr.mxu0 0.0
      %744 = vmatpush1.msra.mxu0 0.0
      %745 = vmatprep.subr.mxu0 0.0
      %746 = vmatpush1.msra.mxu0 0.0
      %747 = vmatprep.mubr.f32.mxu0 0.0
      %748 = vmatmul.mubr.f32.gmra.mrb[0].mxu0 %v678
      %v749 = vpop.f32.mrb[0].mxu0
      %v750 = vadd.f32 0.0, %v749
      %v751 = vpop.f32.mrb[0].mxu0
      %752 = vdwg.mxu0
      %v753 = vadd.f32 %v672, %v750
      %s754 = scalar_lea.vmem %s0, 32
      %v755 = vld [vmem:[%s754] sm:$0xff]
      %v757 = vsel %vm439, %v755, 0
      %v760 = vsel %vm443, %v674, 0
      %762 = vmatprep.subr.mxu0 0.0
      %763 = vmatpush1.msra.mxu0 %v760
      %764 = vmatprep.subr.mxu0 0.0
      %765 = vmatpush1.msra.mxu0 0.0
      %766 = vmatprep.subr.mxu0 0.0
      %767 = vmatpush1.msra.mxu0 0.0
      %768 = vmatprep.subr.mxu0 0.0
      %769 = vmatpush1.msra.mxu0 0.0
      %770 = vmatprep.subr.mxu0 0.0
      %771 = vmatpush1.msra.mxu0 0.0
      %772 = vmatprep.subr.mxu0 0.0
      %773 = vmatpush1.msra.mxu0 0.0
      %774 = vmatprep.subr.mxu0 0.0
      %775 = vmatpush1.msra.mxu0 0.0
      %776 = vmatprep.subr.mxu0 0.0
      %777 = vmatpush1.msra.mxu0 0.0
      %778 = vmatprep.subr.mxu0 0.0
      %779 = vmatpush1.msra.mxu0 0.0
      %780 = vmatprep.subr.mxu0 0.0
      %781 = vmatpush1.msra.mxu0 0.0
      %782 = vmatprep.subr.mxu0 0.0
      %783 = vmatpush1.msra.mxu0 0.0
      %784 = vmatprep.subr.mxu0 0.0
      %785 = vmatpush1.msra.mxu0 0.0
      %786 = vmatprep.subr.mxu0 0.0
      %787 = vmatpush1.msra.mxu0 0.0
      %788 = vmatprep.subr.mxu0 0.0
      %789 = vmatpush1.msra.mxu0 0.0
      %790 = vmatprep.subr.mxu0 0.0
      %791 = vmatpush1.msra.mxu0 0.0
      %792 = vmatprep.subr.mxu0 0.0
      %793 = vmatpush1.msra.mxu0 0.0
      %794 = vmatprep.subr.mxu0 0.0
      %795 = vmatpush1.msra.mxu0 0.0
      %796 = vmatprep.subr.mxu0 0.0
      %797 = vmatpush1.msra.mxu0 0.0
      %798 = vmatprep.subr.mxu0 0.0
      %799 = vmatpush1.msra.mxu0 0.0
      %800 = vmatprep.subr.mxu0 0.0
      %801 = vmatpush1.msra.mxu0 0.0
      %802 = vmatprep.subr.mxu0 0.0
      %803 = vmatpush1.msra.mxu0 0.0
      %804 = vmatprep.subr.mxu0 0.0
      %805 = vmatpush1.msra.mxu0 0.0
      %806 = vmatprep.subr.mxu0 0.0
      %807 = vmatpush1.msra.mxu0 0.0
      %808 = vmatprep.subr.mxu0 0.0
      %809 = vmatpush1.msra.mxu0 0.0
      %810 = vmatprep.subr.mxu0 0.0
      %811 = vmatpush1.msra.mxu0 0.0
      %812 = vmatprep.subr.mxu0 0.0
      %813 = vmatpush1.msra.mxu0 0.0
      %814 = vmatprep.subr.mxu0 0.0
      %815 = vmatpush1.msra.mxu0 0.0
      %816 = vmatprep.subr.mxu0 0.0
      %817 = vmatpush1.msra.mxu0 0.0
      %818 = vmatprep.subr.mxu0 0.0
      %819 = vmatpush1.msra.mxu0 0.0
      %820 = vmatprep.subr.mxu0 0.0
      %821 = vmatpush1.msra.mxu0 0.0
      %822 = vmatprep.subr.mxu0 0.0
      %823 = vmatpush1.msra.mxu0 0.0
      %824 = vmatprep.subr.mxu0 0.0
      %825 = vmatpush1.msra.mxu0 0.0
      %826 = vmatprep.mubr.f32.mxu0 0.0
      %827 = vmatmul.mubr.f32.gmra.mrb[0].mxu0 %v757
      %v828 = vpop.f32.mrb[0].mxu0
      %v829 = vadd.f32 0.0, %v828
      %v830 = vpop.f32.mrb[0].mxu0
      %831 = vdwg.mxu0
      %v832 = vadd.f32 %v753, %v829
      %s833 = scalar_lea.vmem %s0, 56
      %v834 = vld [vmem:[%s833] sm:$0xff]
      %835 = vrot.lane.b32.xlu0 %v673, 120
      %v836 = vpop.permute.xlu0 %835
      %v838 = vsel %vm439, %v834, 0
      %v840 = vsel %vm443, %v836, 0
      %842 = vmatprep.subr.mxu0 0.0
      %843 = vmatpush1.msra.mxu0 %v840
      %844 = vmatprep.subr.mxu0 0.0
      %845 = vmatpush1.msra.mxu0 0.0
      %846 = vmatprep.subr.mxu0 0.0
      %847 = vmatpush1.msra.mxu0 0.0
      %848 = vmatprep.subr.mxu0 0.0
      %849 = vmatpush1.msra.mxu0 0.0
      %850 = vmatprep.subr.mxu0 0.0
      %851 = vmatpush1.msra.mxu0 0.0
      %852 = vmatprep.subr.mxu0 0.0
      %853 = vmatpush1.msra.mxu0 0.0
      %854 = vmatprep.subr.mxu0 0.0
      %855 = vmatpush1.msra.mxu0 0.0
      %856 = vmatprep.subr.mxu0 0.0
      %857 = vmatpush1.msra.mxu0 0.0
      %858 = vmatprep.subr.mxu0 0.0
      %859 = vmatpush1.msra.mxu0 0.0
      %860 = vmatprep.subr.mxu0 0.0
      %861 = vmatpush1.msra.mxu0 0.0
      %862 = vmatprep.subr.mxu0 0.0
      %863 = vmatpush1.msra.mxu0 0.0
      %864 = vmatprep.subr.mxu0 0.0
      %865 = vmatpush1.msra.mxu0 0.0
      %866 = vmatprep.subr.mxu0 0.0
      %867 = vmatpush1.msra.mxu0 0.0
      %868 = vmatprep.subr.mxu0 0.0
      %869 = vmatpush1.msra.mxu0 0.0
      %870 = vmatprep.subr.mxu0 0.0
      %871 = vmatpush1.msra.mxu0 0.0
      %872 = vmatprep.subr.mxu0 0.0
      %873 = vmatpush1.msra.mxu0 0.0
      %874 = vmatprep.subr.mxu0 0.0
      %875 = vmatpush1.msra.mxu0 0.0
      %876 = vmatprep.subr.mxu0 0.0
      %877 = vmatpush1.msra.mxu0 0.0
      %878 = vmatprep.subr.mxu0 0.0
      %879 = vmatpush1.msra.mxu0 0.0
      %880 = vmatprep.subr.mxu0 0.0
      %881 = vmatpush1.msra.mxu0 0.0
      %882 = vmatprep.subr.mxu0 0.0
      %883 = vmatpush1.msra.mxu0 0.0
      %884 = vmatprep.subr.mxu0 0.0
      %885 = vmatpush1.msra.mxu0 0.0
      %886 = vmatprep.subr.mxu0 0.0
      %887 = vmatpush1.msra.mxu0 0.0
      %888 = vmatprep.subr.mxu0 0.0
      %889 = vmatpush1.msra.mxu0 0.0
      %890 = vmatprep.subr.mxu0 0.0
      %891 = vmatpush1.msra.mxu0 0.0
      %892 = vmatprep.subr.mxu0 0.0
      %893 = vmatpush1.msra.mxu0 0.0
      %894 = vmatprep.subr.mxu0 0.0
      %895 = vmatpush1.msra.mxu0 0.0
      %896 = vmatprep.subr.mxu0 0.0
      %897 = vmatpush1.msra.mxu0 0.0
      %898 = vmatprep.subr.mxu0 0.0
      %899 = vmatpush1.msra.mxu0 0.0
      %900 = vmatprep.subr.mxu0 0.0
      %901 = vmatpush1.msra.mxu0 0.0
      %902 = vmatprep.subr.mxu0 0.0
      %903 = vmatpush1.msra.mxu0 0.0
      %904 = vmatprep.subr.mxu0 0.0
      %905 = vmatpush1.msra.mxu0 0.0
      %906 = vmatprep.mubr.f32.mxu0 0.0
      %907 = vmatmul.mubr.f32.gmra.mrb[0].mxu0 %v838
      %v908 = vpop.f32.mrb[0].mxu0
      %v909 = vadd.f32 0.0, %v908
      %v910 = vpop.f32.mrb[0].mxu0
      %911 = vdwg.mxu0
      %v912 = vadd.f32 %v832, %v909
      %v913 = vld [vmem:[%s409] sm:$0xf]
      %v914 = vld [vmem:[%s421] sm:$0xf]
      %s915 = scalar_lea.vmem %s0, 16
      %v916 = vld [vmem:[%s915] sm:$0xff]
      %v918 = vsel %vm439, %v916, 0
      %v921 = vsel %vm443, %v913, 0
      %923 = vmatprep.subr.mxu0 0.0
      %924 = vmatpush1.msra.mxu0 %v921
      %925 = vmatprep.subr.mxu0 0.0
      %926 = vmatpush1.msra.mxu0 0.0
      %927 = vmatprep.subr.mxu0 0.0
      %928 = vmatpush1.msra.mxu0 0.0
      %929 = vmatprep.subr.mxu0 0.0
      %930 = vmatpush1.msra.mxu0 0.0
      %931 = vmatprep.subr.mxu0 0.0
      %932 = vmatpush1.msra.mxu0 0.0
      %933 = vmatprep.subr.mxu0 0.0
      %934 = vmatpush1.msra.mxu0 0.0
      %935 = vmatprep.subr.mxu0 0.0
      %936 = vmatpush1.msra.mxu0 0.0
      %937 = vmatprep.subr.mxu0 0.0
      %938 = vmatpush1.msra.mxu0 0.0
      %939 = vmatprep.subr.mxu0 0.0
      %940 = vmatpush1.msra.mxu0 0.0
      %941 = vmatprep.subr.mxu0 0.0
      %942 = vmatpush1.msra.mxu0 0.0
      %943 = vmatprep.subr.mxu0 0.0
      %944 = vmatpush1.msra.mxu0 0.0
      %945 = vmatprep.subr.mxu0 0.0
      %946 = vmatpush1.msra.mxu0 0.0
      %947 = vmatprep.subr.mxu0 0.0
      %948 = vmatpush1.msra.mxu0 0.0
      %949 = vmatprep.subr.mxu0 0.0
      %950 = vmatpush1.msra.mxu0 0.0
      %951 = vmatprep.subr.mxu0 0.0
      %952 = vmatpush1.msra.mxu0 0.0
      %953 = vmatprep.subr.mxu0 0.0
      %954 = vmatpush1.msra.mxu0 0.0
      %955 = vmatprep.subr.mxu0 0.0
      %956 = vmatpush1.msra.mxu0 0.0
      %957 = vmatprep.subr.mxu0 0.0
      %958 = vmatpush1.msra.mxu0 0.0
      %959 = vmatprep.subr.mxu0 0.0
      %960 = vmatpush1.msra.mxu0 0.0
      %961 = vmatprep.subr.mxu0 0.0
      %962 = vmatpush1.msra.mxu0 0.0
      %963 = vmatprep.subr.mxu0 0.0
      %964 = vmatpush1.msra.mxu0 0.0
      %965 = vmatprep.subr.mxu0 0.0
      %966 = vmatpush1.msra.mxu0 0.0
      %967 = vmatprep.subr.mxu0 0.0
      %968 = vmatpush1.msra.mxu0 0.0
      %969 = vmatprep.subr.mxu0 0.0
      %970 = vmatpush1.msra.mxu0 0.0
      %971 = vmatprep.subr.mxu0 0.0
      %972 = vmatpush1.msra.mxu0 0.0
      %973 = vmatprep.subr.mxu0 0.0
      %974 = vmatpush1.msra.mxu0 0.0
      %975 = vmatprep.subr.mxu0 0.0
      %976 = vmatpush1.msra.mxu0 0.0
      %977 = vmatprep.subr.mxu0 0.0
      %978 = vmatpush1.msra.mxu0 0.0
      %979 = vmatprep.subr.mxu0 0.0
      %980 = vmatpush1.msra.mxu0 0.0
      %981 = vmatprep.subr.mxu0 0.0
      %982 = vmatpush1.msra.mxu0 0.0
      %983 = vmatprep.subr.mxu0 0.0
      %984 = vmatpush1.msra.mxu0 0.0
      %985 = vmatprep.subr.mxu0 0.0
      %986 = vmatpush1.msra.mxu0 0.0
      %987 = vmatprep.mubr.f32.mxu0 0.0
      %988 = vmatmul.mubr.f32.gmra.mrb[0].mxu0 %v918
      %v989 = vpop.f32.mrb[0].mxu0
      %v990 = vadd.f32 0.0, %v989
      %v991 = vpop.f32.mrb[0].mxu0
      %992 = vdwg.mxu0
      %v993 = vadd.f32 %v912, %v990
      %s994 = scalar_lea.vmem %s0, 40
      %v995 = vld [vmem:[%s994] sm:$0xff]
      %v997 = vsel %vm439, %v995, 0
      %v1000 = vsel %vm443, %v914, 0
      %1002 = vmatprep.subr.mxu0 0.0
      %1003 = vmatpush1.msra.mxu0 %v1000
      %1004 = vmatprep.subr.mxu0 0.0
      %1005 = vmatpush1.msra.mxu0 0.0
      %1006 = vmatprep.subr.mxu0 0.0
      %1007 = vmatpush1.msra.mxu0 0.0
      %1008 = vmatprep.subr.mxu0 0.0
      %1009 = vmatpush1.msra.mxu0 0.0
      %1010 = vmatprep.subr.mxu0 0.0
      %1011 = vmatpush1.msra.mxu0 0.0
      %1012 = vmatprep.subr.mxu0 0.0
      %1013 = vmatpush1.msra.mxu0 0.0
      %1014 = vmatprep.subr.mxu0 0.0
      %1015 = vmatpush1.msra.mxu0 0.0
      %1016 = vmatprep.subr.mxu0 0.0
      %1017 = vmatpush1.msra.mxu0 0.0
      %1018 = vmatprep.subr.mxu0 0.0
      %1019 = vmatpush1.msra.mxu0 0.0
      %1020 = vmatprep.subr.mxu0 0.0
      %1021 = vmatpush1.msra.mxu0 0.0
      %1022 = vmatprep.subr.mxu0 0.0
      %1023 = vmatpush1.msra.mxu0 0.0
      %1024 = vmatprep.subr.mxu0 0.0
      %1025 = vmatpush1.msra.mxu0 0.0
      %1026 = vmatprep.subr.mxu0 0.0
      %1027 = vmatpush1.msra.mxu0 0.0
      %1028 = vmatprep.subr.mxu0 0.0
      %1029 = vmatpush1.msra.mxu0 0.0
      %1030 = vmatprep.subr.mxu0 0.0
      %1031 = vmatpush1.msra.mxu0 0.0
      %1032 = vmatprep.subr.mxu0 0.0
      %1033 = vmatpush1.msra.mxu0 0.0
      %1034 = vmatprep.subr.mxu0 0.0
      %1035 = vmatpush1.msra.mxu0 0.0
      %1036 = vmatprep.subr.mxu0 0.0
      %1037 = vmatpush1.msra.mxu0 0.0
      %1038 = vmatprep.subr.mxu0 0.0
      %1039 = vmatpush1.msra.mxu0 0.0
      %1040 = vmatprep.subr.mxu0 0.0
      %1041 = vmatpush1.msra.mxu0 0.0
      %1042 = vmatprep.subr.mxu0 0.0
      %1043 = vmatpush1.msra.mxu0 0.0
      %1044 = vmatprep.subr.mxu0 0.0
      %1045 = vmatpush1.msra.mxu0 0.0
      %1046 = vmatprep.subr.mxu0 0.0
      %1047 = vmatpush1.msra.mxu0 0.0
      %1048 = vmatprep.subr.mxu0 0.0
      %1049 = vmatpush1.msra.mxu0 0.0
      %1050 = vmatprep.subr.mxu0 0.0
      %1051 = vmatpush1.msra.mxu0 0.0
      %1052 = vmatprep.subr.mxu0 0.0
      %1053 = vmatpush1.msra.mxu0 0.0
      %1054 = vmatprep.subr.mxu0 0.0
      %1055 = vmatpush1.msra.mxu0 0.0
      %1056 = vmatprep.subr.mxu0 0.0
      %1057 = vmatpush1.msra.mxu0 0.0
      %1058 = vmatprep.subr.mxu0 0.0
      %1059 = vmatpush1.msra.mxu0 0.0
      %1060 = vmatprep.subr.mxu0 0.0
      %1061 = vmatpush1.msra.mxu0 0.0
      %1062 = vmatprep.subr.mxu0 0.0
      %1063 = vmatpush1.msra.mxu0 0.0
      %1064 = vmatprep.subr.mxu0 0.0
      %1065 = vmatpush1.msra.mxu0 0.0
      %1066 = vmatprep.mubr.f32.mxu0 0.0
      %1067 = vmatmul.mubr.f32.gmra.mrb[0].mxu0 %v997
      %v1068 = vpop.f32.mrb[0].mxu0
      %v1069 = vadd.f32 0.0, %v1068
      %v1070 = vpop.f32.mrb[0].mxu0
      %1071 = vdwg.mxu0
      %v1072 = vadd.f32 %v993, %v1069
      %s1073 = scalar_lea.vmem %s0, 64
      %v1074 = vld [vmem:[%s1073] sm:$0xff]
      %1075 = vrot.lane.b32.xlu0 %v913, 120
      %v1076 = vpop.permute.xlu0 %1075
      %v1078 = vsel %vm439, %v1074, 0
      %v1080 = vsel %vm443, %v1076, 0
      %1082 = vmatprep.subr.mxu0 0.0
      %1083 = vmatpush1.msra.mxu0 %v1080
      %1084 = vmatprep.subr.mxu0 0.0
      %1085 = vmatpush1.msra.mxu0 0.0
      %1086 = vmatprep.subr.mxu0 0.0
      %1087 = vmatpush1.msra.mxu0 0.0
      %1088 = vmatprep.subr.mxu0 0.0
      %1089 = vmatpush1.msra.mxu0 0.0
      %1090 = vmatprep.subr.mxu0 0.0
      %1091 = vmatpush1.msra.mxu0 0.0
      %1092 = vmatprep.subr.mxu0 0.0
      %1093 = vmatpush1.msra.mxu0 0.0
      %1094 = vmatprep.subr.mxu0 0.0
      %1095 = vmatpush1.msra.mxu0 0.0
      %1096 = vmatprep.subr.mxu0 0.0
      %1097 = vmatpush1.msra.mxu0 0.0
      %1098 = vmatprep.subr.mxu0 0.0
      %1099 = vmatpush1.msra.mxu0 0.0
      %1100 = vmatprep.subr.mxu0 0.0
      %1101 = vmatpush1.msra.mxu0 0.0
      %1102 = vmatprep.subr.mxu0 0.0
      %1103 = vmatpush1.msra.mxu0 0.0
      %1104 = vmatprep.subr.mxu0 0.0
      %1105 = vmatpush1.msra.mxu0 0.0
      %1106 = vmatprep.subr.mxu0 0.0
      %1107 = vmatpush1.msra.mxu0 0.0
      %1108 = vmatprep.subr.mxu0 0.0
      %1109 = vmatpush1.msra.mxu0 0.0
      %1110 = vmatprep.subr.mxu0 0.0
      %1111 = vmatpush1.msra.mxu0 0.0
      %1112 = vmatprep.subr.mxu0 0.0
      %1113 = vmatpush1.msra.mxu0 0.0
      %1114 = vmatprep.subr.mxu0 0.0
      %1115 = vmatpush1.msra.mxu0 0.0
      %1116 = vmatprep.subr.mxu0 0.0
      %1117 = vmatpush1.msra.mxu0 0.0
      %1118 = vmatprep.subr.mxu0 0.0
      %1119 = vmatpush1.msra.mxu0 0.0
      %1120 = vmatprep.subr.mxu0 0.0
      %1121 = vmatpush1.msra.mxu0 0.0
      %1122 = vmatprep.subr.mxu0 0.0
      %1123 = vmatpush1.msra.mxu0 0.0
      %1124 = vmatprep.subr.mxu0 0.0
      %1125 = vmatpush1.msra.mxu0 0.0
      %1126 = vmatprep.subr.mxu0 0.0
      %1127 = vmatpush1.msra.mxu0 0.0
      %1128 = vmatprep.subr.mxu0 0.0
      %1129 = vmatpush1.msra.mxu0 0.0
      %1130 = vmatprep.subr.mxu0 0.0
      %1131 = vmatpush1.msra.mxu0 0.0
      %1132 = vmatprep.subr.mxu0 0.0
      %1133 = vmatpush1.msra.mxu0 0.0
      %1134 = vmatprep.subr.mxu0 0.0
      %1135 = vmatpush1.msra.mxu0 0.0
      %1136 = vmatprep.subr.mxu0 0.0
      %1137 = vmatpush1.msra.mxu0 0.0
      %1138 = vmatprep.subr.mxu0 0.0
      %1139 = vmatpush1.msra.mxu0 0.0
      %1140 = vmatprep.subr.mxu0 0.0
      %1141 = vmatpush1.msra.mxu0 0.0
      %1142 = vmatprep.subr.mxu0 0.0
      %1143 = vmatpush1.msra.mxu0 0.0
      %1144 = vmatprep.subr.mxu0 0.0
      %1145 = vmatpush1.msra.mxu0 0.0
      %1146 = vmatprep.mubr.f32.mxu0 0.0
      %1147 = vmatmul.mubr.f32.gmra.mrb[0].mxu0 %v1078
      %v1148 = vpop.f32.mrb[0].mxu0
      %v1149 = vadd.f32 0.0, %v1148
      %v1150 = vpop.f32.mrb[0].mxu0
      %1151 = vdwg.mxu0
      %v1152 = vadd.f32 %v1072, %v1149
      %vm1153 = vcmask 523264
      %1154 = vst.msk [vmem:[%s425] sm:$0xff] %vm1153, %v1152
      %v1155 = vsel %vm1153, %v1152, 0.0
      %1156 = vadd.xlane.f32.xlu0 %v1155
      %v1157 = vpop.xlane.xlu0 %1156
      %vm1158 = vcmask 7168
      %1159 = vst.msk [vmem:[%s429] sm:$0xff] %vm1158, %v1157
      %v1160 = vmul.f32 %v1152, %v1152
      %v1161 = vsel %vm1153, %v1160, 0.0
      %1162 = vadd.xlane.f32.xlu0 %v1161
      %v1163 = vpop.xlane.xlu0 %1162
      %1164 = vst.msk [vmem:[%s433] sm:$0xff] %vm1158, %v1163
      %p1165 = scmp.lt.s32.totalorder %s21, 1
      %s1166 = scalar_select %p1165, %s21, 1
      %s1167 = smul.addr %s1166, 8
      %s1168 = scalar_lea.vmem %s7, %s1167
      %p1169 = scmp.lt.s32.totalorder %s21, 1
      %s1170 = scalar_select %p1169, %s21, 1
      %s1171 = smul.addr %s1170, 8
      %s1172 = scalar_lea.vmem %s8, %s1171
      %p1173 = scmp.lt.s32.totalorder %s21, 1
      %s1174 = scalar_select %p1173, %s21, 1
      %s1175 = smul.addr %s1174, 8
      %s1176 = scalar_lea.vmem %s9, %s1175
      // Predicated region
      $region49: #{conv_bn_lrelu.2} parent=47 // pred_check
        %p1177 = pneg %p216
      $region50: #{conv_bn_lrelu.2} parent=47 // pred_check_branch
        %1179 = sbr.rel (%p1177) target = $region52
      $region51: #{conv_bn_lrelu.2} parent=47 // pred_region
        _
      $region52: #{conv_bn_lrelu.2} parent=47 // pred_fallthru
        _
      // Predicated region
      $region53: #{conv_bn_lrelu.2} parent=47 // pred_check
        %p1180 = pneg %p242
      $region54: #{conv_bn_lrelu.2} parent=47 // pred_check_branch
        %1182 = sbr.rel (%p1180) target = $region56
      $region55: #{conv_bn_lrelu.2} parent=47 // pred_region
        _
      $region56: #{conv_bn_lrelu.2} parent=47 // pred_fallthru
        _
      // Predicated region
      $region57: #{conv_bn_lrelu.2} parent=47 // pred_check
        %p1183 = pneg %p268
      $region58: #{conv_bn_lrelu.2} parent=47 // pred_check_branch
        %1185 = sbr.rel (%p1183) target = $region60
      $region59: #{conv_bn_lrelu.2} parent=47 // pred_region
        _
      $region60: #{conv_bn_lrelu.2} parent=47 // pred_fallthru
        _
    $region48: #{conv_bn_lrelu.2} parent=5 // pred_fallthru
      _
    %p1186 = scmp.le.s32.totalorder 2, %s16
    // Predicated region
    $region61: #{conv_bn_lrelu.2} parent=5 // pred_check
      %p1187 = pneg %p1186
    $region62: #{conv_bn_lrelu.2} parent=5 // pred_check_branch
      %1189 = sbr.rel (%p1187) target = $region64
    $region63: #{conv_bn_lrelu.2} parent=5 // pred_region
      %s1190 = ssub.s32 %s16, 2
      // Predicated region
      $region65: #{conv_bn_lrelu.2} parent=63 // pred_check
        %p1191 = pneg %p222
      $region66: #{conv_bn_lrelu.2} parent=63 // pred_check_branch
        %1193 = sbr.rel (%p1191) target = $region68
      $region67: #{conv_bn_lrelu.2} parent=63 // pred_region
        %p1194 = scmp.lt.s32.totalorder %s22, 1
        %s1195 = scalar_select %p1194, %s22, 1
        %s1196 = smul.addr %s1195, 8
        %s1197 = scalar_lea.vmem %s7, %s1196
      $region68: #{conv_bn_lrelu.2} parent=63 // pred_fallthru
        _
      // Predicated region
      $region69: #{conv_bn_lrelu.2} parent=63 // pred_check
        %p1198 = pneg %p248
      $region70: #{conv_bn_lrelu.2} parent=63 // pred_check_branch
        %1200 = sbr.rel (%p1198) target = $region72
      $region71: #{conv_bn_lrelu.2} parent=63 // pred_region
        %p1201 = scmp.lt.s32.totalorder %s22, 1
        %s1202 = scalar_select %p1201, %s22, 1
        %s1203 = smul.addr %s1202, 8
        %s1204 = scalar_lea.vmem %s8, %s1203
      $region72: #{conv_bn_lrelu.2} parent=63 // pred_fallthru
        _
      // Predicated region
      $region73: #{conv_bn_lrelu.2} parent=63 // pred_check
        %p1205 = pneg %p274
      $region74: #{conv_bn_lrelu.2} parent=63 // pred_check_branch
        %1207 = sbr.rel (%p1205) target = $region76
      $region75: #{conv_bn_lrelu.2} parent=63 // pred_region
        %p1208 = scmp.lt.s32.totalorder %s22, 1
        %s1209 = scalar_select %p1208, %s22, 1
        %s1210 = smul.addr %s1209, 8
        %s1211 = scalar_lea.vmem %s9, %s1210
      $region76: #{conv_bn_lrelu.2} parent=63 // pred_fallthru
        _
    $region64: #{conv_bn_lrelu.2} parent=5 // pred_fallthru
      _
  $region6: #{conv_bn_lrelu.2} parent=0 // loop_footer
    %s20 = sadd.s32 1, %s16
  $region7: #{conv_bn_lrelu.2} parent=0 // loop_footer_branch
    %15 = sbr.rel target = $region3
  $region8: #{conv_bn_lrelu.2} parent=0 // loop_exit
    _

</llo_original>
